<compile_context>
chip_gen: v5e
topology: v5e:2x2
jax: 0.10.0
libtpu: 0.0.40
codegen_flags: <defaults>
</compile_context>

<pallas_src>
import math
import numpy as np
import jax
import jax.numpy as jnp
from jax.experimental import pallas as pl
from jax.experimental.pallas import tpu as pltpu

# ----- config (EsmConfig with position_embedding_type='rotary', is_decoder=False)
B, S, H = 2, 8, 32          # batch, seq_len, hidden_size
NH = 4                      # num_attention_heads
DH = H // NH                # attention_head_size
I = 64                      # intermediate_size
EPS = 1e-5                  # layer_norm_eps
SCALE = 1.0 / math.sqrt(DH)
BS = B * S

# packed-operand column layout (weight / bias slabs)
_QKV = slice(0, 3 * H)           # fused Wq|Wk|Wv  /  bq|bk|bv   (Wq/bq pre-scaled)
_WO = slice(3 * H, 4 * H)        # attention self-output dense
_WI = slice(4 * H, 4 * H + I)    # intermediate dense


def _layernorm(x, g, b):
    mu = jnp.mean(x, axis=-1, keepdims=True)
    var = jnp.mean((x - mu) ** 2, axis=-1, keepdims=True)
    return (x - mu) * jax.lax.rsqrt(var + EPS) * g + b


def _gelu(x):
    # original-ESM gelu (erf form)
    return x * 0.5 * (1.0 + jax.lax.erf(x / math.sqrt(2.0)))


def esm_layer_kernel(x_ref, rot_ref, w1_ref, b1_ref, w2_ref, lnp_ref, out_ref):
    x = x_ref[...]                                        # (B*S, H)

    ln1g, ln1b = lnp_ref[0:1, :], lnp_ref[1:2, :]
    ln2g, ln2b = lnp_ref[2:3, :], lnp_ref[3:4, :]
    bo2 = lnp_ref[4:5, :]

    # --- EsmAttention.LayerNorm (pre-attention LN), all B*S rows at once
    h_ln = _layernorm(x, ln1g, ln1b)

    # --- fused QKV projection: one MXU push (SCALE already folded into Wq/bq)
    qkv = (jnp.dot(h_ln, w1_ref[:, _QKV], preferred_element_type=jnp.float32)
           + b1_ref[:, _QKV])

    # --- split heads into the einsum batch dimension: (B*S, H) -> (NH*B, S, DH)
    def split_heads(t2d):
        t3 = t2d.reshape(B, S, H)
        return jnp.concatenate(
            [t3[:, :, h * DH:(h + 1) * DH] for h in range(NH)], axis=0)

    qh = split_heads(qkv[:, 0:H])
    kh = split_heads(qkv[:, H:2 * H])
    vh = split_heads(qkv[:, 2 * H:3 * H])

    # --- rotary embedding on the head dim: rotate_half == half-width lane roll
    # with the sign folded into the sin table (exact equivalent, direction-free).
    cosd = rot_ref[0]                                     # (S, DH), bcast over NH*B
    sind = rot_ref[1]                                     # (S, DH), -sin | +sin halves
    d = DH // 2

    def apply_rotary(t):                                  # t: (NH*B, S, DH)
        rolled = jnp.concatenate([t[..., d:], t[..., :d]], axis=-1)
        return t * cosd + rolled * sind

    qh = apply_rotary(qh)
    kh = apply_rotary(kh)

    # --- attention: one batched score matmul, ONE softmax chain, one batched PV
    s = jnp.einsum('bqd,bkd->bqk', qh, kh,
                   preferred_element_type=jnp.float32)    # (NH*B, S, S)
    s = s - jnp.max(s, axis=-1, keepdims=True)
    e = jnp.exp(s)
    p = e * pl.reciprocal(jnp.sum(e, axis=-1, keepdims=True), approx=False)
    ctx = jnp.einsum('bqk,bkd->bqd', p, vh,
                     preferred_element_type=jnp.float32)  # (NH*B, S, DH)

    # merge heads back: (NH*B, S, DH) -> (B, S, H) head-major in lanes -> (BS, H)
    ctx_full = jnp.concatenate(
        [ctx[h * B:(h + 1) * B] for h in range(NH)], axis=-1).reshape(BS, H)

    # --- EsmSelfOutput: dense + residual (dropout = 0 at inference)
    attn_out = (jnp.dot(ctx_full, w1_ref[:, _WO], preferred_element_type=jnp.float32)
                + b1_ref[:, _WO] + x)

    # --- feed_forward_chunk: LN -> intermediate(gelu) -> output dense + residual
    ffn_ln = _layernorm(attn_out, ln2g, ln2b)
    inter = _gelu(jnp.dot(ffn_ln, w1_ref[:, _WI], preferred_element_type=jnp.float32)
                  + b1_ref[:, _WI])
    out_ref[...] = (jnp.dot(inter, w2_ref[...], preferred_element_type=jnp.float32)
                    + bo2 + attn_out)


def rotary_tables(seq_len, dim):
    inv_freq = 1.0 / (10000.0 ** (jnp.arange(0, dim, 2, dtype=jnp.float32) / dim))
    t = jnp.arange(seq_len, dtype=jnp.float32)
    freqs = jnp.outer(t, inv_freq)                       # (S, dim/2)
    emb = jnp.concatenate([freqs, freqs], axis=-1)       # (S, dim)
    return jnp.cos(emb), jnp.sin(emb)


def pack_params(params):
    """One-time parameter packing (hoisted out of the per-call path).

    Returns the packed slabs that in real use would be the stored module state:
      w1  (H, 4H+I)  = [Wq*SCALE | Wk | Wv | Wo | Wi]
      b1  (1, 4H+I)  = [bq*SCALE | bk | bv | bo | bi]
      w2  (I, H)     = output dense
      lnp (5, H)     = [ln1_g, ln1_b, ln2_g, ln2_b, bo2]
      rot (2, S, DH) = [cos, sign-folded sin]
    """
    (ln1g, ln1b, wq, bq, wk, bk, wv, bv, wo, bo,
     ln2g, ln2b, wi, bi, wo2, bo2) = params

    w1 = jnp.concatenate([wq * SCALE, wk, wv, wo, wi], axis=1)
    b1 = jnp.concatenate([bq * SCALE, bk, bv, bo, bi], axis=1)
    lnp = jnp.concatenate([ln1g, ln1b, ln2g, ln2b, bo2], axis=0)

    cos, sin = rotary_tables(S, DH)                      # (S, DH)
    sign = jnp.where(jnp.arange(DH) < DH // 2, -1.0, 1.0).astype(jnp.float32)
    rot = jnp.stack([cos, sign * sin], axis=0)           # (2, S, DH)

    return w1, b1, wo2, lnp, rot


@jax.jit
def esm_layer_pallas(x, w1, b1, w2, lnp, rot):
    x2d = x.reshape(BS, H)
    vmem_spec = pl.BlockSpec(memory_space=pltpu.MemorySpace.VMEM)
    out2d = pl.pallas_call(
        esm_layer_kernel,
        out_shape=jax.ShapeDtypeStruct((BS, H), jnp.float32),
        in_specs=[vmem_spec] * 6,
        out_specs=vmem_spec,
    )(x2d, rot, w1, b1, w2, lnp)
    return out2d.reshape(B, S, H)


# ---------------- pure-JAX reference (mirrors the torch module exactly) ----------------
def esm_layer_ref(x, params):
    (ln1g, ln1b, wq, bq, wk, bk, wv, bv, wo, bo,
     ln2g, ln2b, wi, bi, wo2, bo2) = params
    cos, sin = rotary_tables(S, DH)

    def ln(v, g, b):
        mu = jnp.mean(v, axis=-1, keepdims=True)
        var = jnp.mean((v - mu) ** 2, axis=-1, keepdims=True)
        return (v - mu) / jnp.sqrt(var + EPS) * g + b

    def rot_half(v):
        d = v.shape[-1] // 2
        return jnp.concatenate([-v[..., d:], v[..., :d]], axis=-1)

    h_ln = ln(x, ln1g, ln1b)
    q = h_ln @ wq + bq
    k = h_ln @ wk + bk
    v = h_ln @ wv + bv
    # (B, S, H) -> (B, NH, S, DH)
    q = q.reshape(B, S, NH, DH).transpose(0, 2, 1, 3) * SCALE
    k = k.reshape(B, S, NH, DH).transpose(0, 2, 1, 3)
    v = v.reshape(B, S, NH, DH).transpose(0, 2, 1, 3)
    q = q * cos + rot_half(q) * sin
    k = k * cos + rot_half(k) * sin
    scores = jnp.einsum('bhqd,bhkd->bhqk', q, k)
    probs = jax.nn.softmax(scores, axis=-1)
    ctx = jnp.einsum('bhqk,bhkd->bhqd', probs, v)
    ctx = ctx.transpose(0, 2, 1, 3).reshape(B, S, H)
    attn_out = ctx @ wo + bo + x
    ffn_ln = ln(attn_out, ln2g, ln2b)
    inter = ffn_ln @ wi + bi
    inter = inter * 0.5 * (1.0 + jax.lax.erf(inter / math.sqrt(2.0)))
    return inter @ wo2 + bo2 + attn_out


def make_params(key):
    ks = jax.random.split(key, 16)
    w = lambda k, shp: (0.02 * jax.random.normal(k, shp)).astype(jnp.float32)
    params = [
        (1.0 + 0.1 * jax.random.normal(ks[0], (1, H))).astype(jnp.float32),  # ln1 gamma
        w(ks[1], (1, H)),                                                    # ln1 beta
        w(ks[2], (H, H)), w(ks[3], (1, H)),                                  # Wq, bq
        w(ks[4], (H, H)), w(ks[5], (1, H)),                                  # Wk, bk
        w(ks[6], (H, H)), w(ks[7], (1, H)),                                  # Wv, bv
        w(ks[8], (H, H)), w(ks[9], (1, H)),                                  # Wo, bo  (self-output)
        (1.0 + 0.1 * jax.random.normal(ks[10], (1, H))).astype(jnp.float32), # ln2 gamma
        w(ks[11], (1, H)),                                                   # ln2 beta
        w(ks[12], (H, I)), w(ks[13], (1, I)),                                # Wi, bi  (intermediate)
        w(ks[14], (I, H)), w(ks[15], (1, H)),                                # Wo2, bo2 (output)
    ]
    return params


if __name__ == "__main__":
    key = jax.random.PRNGKey(0)
    kx, kp = jax.random.split(key)
    x = jax.random.normal(kx, (B, S, H), dtype=jnp.float32)
    params = make_params(kp)

    # one-time packing (kept off the per-call path)
    packed = pack_params(params)
    packed = tuple(jax.block_until_ready(p) for p in packed)

    out = esm_layer_pallas(x, *packed)
    jax.block_until_ready(out)

    ref = esm_layer_ref(x, params)
    np.testing.assert_allclose(np.asarray(out), np.asarray(ref), rtol=1e-4, atol=1e-4)

    print("KERNEL_OK")
</pallas_src>

<mosaic_0001>
module attributes {stable_mosaic.version = 11 : i64} {
  func.func @esm_layer_kernel(%arg0: memref<16x32xf32, #tpu.memory_space<vmem>>, %arg1: memref<2x8x8xf32, #tpu.memory_space<vmem>>, %arg2: memref<32x192xf32, #tpu.memory_space<vmem>>, %arg3: memref<1x192xf32, #tpu.memory_space<vmem>>, %arg4: memref<64x32xf32, #tpu.memory_space<vmem>>, %arg5: memref<5x32xf32, #tpu.memory_space<vmem>>, %arg6: memref<16x32xf32, #tpu.memory_space<vmem>>) attributes {dimension_semantics = [], scalar_prefetch = 0 : i64, scratch_operands = 0 : i64, tpu.core_type = #tpu.core_type<tc>} {
    %c0 = arith.constant 0 : index
    %c0_0 = arith.constant 0 : index
    %0 = vector.load %arg0[%c0, %c0_0] : memref<16x32xf32, #tpu.memory_space<vmem>>, vector<16x32xf32>
    %c0_1 = arith.constant 0 : index
    %c0_2 = arith.constant 0 : index
    %1 = vector.load %arg5[%c0_1, %c0_2] : memref<5x32xf32, #tpu.memory_space<vmem>>, vector<1x32xf32>
    %c1 = arith.constant 1 : index
    %c0_3 = arith.constant 0 : index
    %2 = vector.load %arg5[%c1, %c0_3] : memref<5x32xf32, #tpu.memory_space<vmem>>, vector<1x32xf32>
    %c2 = arith.constant 2 : index
    %c0_4 = arith.constant 0 : index
    %3 = vector.load %arg5[%c2, %c0_4] : memref<5x32xf32, #tpu.memory_space<vmem>>, vector<1x32xf32>
    %c3 = arith.constant 3 : index
    %c0_5 = arith.constant 0 : index
    %4 = vector.load %arg5[%c3, %c0_5] : memref<5x32xf32, #tpu.memory_space<vmem>>, vector<1x32xf32>
    %c4 = arith.constant 4 : index
    %c0_6 = arith.constant 0 : index
    %5 = vector.load %arg5[%c4, %c0_6] : memref<5x32xf32, #tpu.memory_space<vmem>>, vector<1x32xf32>
    %cst = arith.constant dense<0.000000e+00> : vector<16xf32>
    %6 = vector.multi_reduction <add>, %0, %cst [1] : vector<16x32xf32> to vector<16xf32>
    %7 = vector.shape_cast %6 : vector<16xf32> to vector<16x1xf32>
    %cst_7 = arith.constant 3.200000e+01 : f32
    %8 = vector.broadcast %cst_7 : f32 to vector<16x1xf32>
    %9 = arith.divf %7, %8 : vector<16x1xf32>
    %10 = vector.broadcast %9 : vector<16x1xf32> to vector<16x32xf32>
    %11 = arith.subf %0, %10 : vector<16x32xf32>
    %12 = arith.mulf %11, %11 : vector<16x32xf32>
    %cst_8 = arith.constant dense<0.000000e+00> : vector<16xf32>
    %13 = vector.multi_reduction <add>, %12, %cst_8 [1] : vector<16x32xf32> to vector<16xf32>
    %14 = vector.shape_cast %13 : vector<16xf32> to vector<16x1xf32>
    %cst_9 = arith.constant 3.200000e+01 : f32
    %15 = vector.broadcast %cst_9 : f32 to vector<16x1xf32>
    %16 = arith.divf %14, %15 : vector<16x1xf32>
    %17 = vector.broadcast %9 : vector<16x1xf32> to vector<16x32xf32>
    %18 = arith.subf %0, %17 : vector<16x32xf32>
    %cst_10 = arith.constant 9.99999974E-6 : f32
    %19 = vector.broadcast %cst_10 : f32 to vector<16x1xf32>
    %20 = arith.addf %16, %19 : vector<16x1xf32>
    %21 = math.rsqrt %20 : vector<16x1xf32>
    %22 = vector.broadcast %21 : vector<16x1xf32> to vector<16x32xf32>
    %23 = arith.mulf %18, %22 : vector<16x32xf32>
    %24 = vector.broadcast %1 : vector<1x32xf32> to vector<16x32xf32>
    %25 = arith.mulf %23, %24 : vector<16x32xf32>
    %26 = vector.broadcast %2 : vector<1x32xf32> to vector<16x32xf32>
    %27 = arith.addf %25, %26 : vector<16x32xf32>
    %c0_11 = arith.constant 0 : index
    %c0_12 = arith.constant 0 : index
    %28 = vector.load %arg2[%c0_11, %c0_12] : memref<32x192xf32, #tpu.memory_space<vmem>>, vector<32x96xf32>
    %cst_13 = arith.constant dense<0.000000e+00> : vector<16x96xf32>
    %29 = tpu.matmul %27, %28, %cst_13 {dimension_numbers = #tpu.dot_dimension_numbers<[1], [0], [0], [1], [0, 0, 1, 1], [], []>} : vector<16x32xf32>, vector<32x96xf32>, vector<16x96xf32> -> vector<16x96xf32>
    %c0_14 = arith.constant 0 : index
    %c0_15 = arith.constant 0 : index
    %30 = vector.load %arg3[%c0_14, %c0_15] : memref<1x192xf32, #tpu.memory_space<vmem>>, vector<1x96xf32>
    %31 = vector.broadcast %30 : vector<1x96xf32> to vector<16x96xf32>
    %32 = arith.addf %29, %31 : vector<16x96xf32>
    %33 = vector.extract_strided_slice %32 {offsets = [0, 0], sizes = [16, 32], strides = [1, 1]} : vector<16x96xf32> to vector<16x32xf32>
    %34 = vector.shape_cast %33 : vector<16x32xf32> to vector<2x8x32xf32>
    %35 = vector.extract_strided_slice %34 {offsets = [0, 0, 0], sizes = [2, 8, 8], strides = [1, 1, 1]} : vector<2x8x32xf32> to vector<2x8x8xf32>
    %36 = vector.extract_strided_slice %34 {offsets = [0, 0, 8], sizes = [2, 8, 8], strides = [1, 1, 1]} : vector<2x8x32xf32> to vector<2x8x8xf32>
    %37 = vector.extract_strided_slice %34 {offsets = [0, 0, 16], sizes = [2, 8, 8], strides = [1, 1, 1]} : vector<2x8x32xf32> to vector<2x8x8xf32>
    %38 = vector.extract_strided_slice %34 {offsets = [0, 0, 24], sizes = [2, 8, 8], strides = [1, 1, 1]} : vector<2x8x32xf32> to vector<2x8x8xf32>
    %39 = tpu.concatenate %35, %36, %37, %38 in 0 : vector<2x8x8xf32>, vector<2x8x8xf32>, vector<2x8x8xf32>, vector<2x8x8xf32> -> vector<8x8x8xf32>
    %40 = vector.extract_strided_slice %32 {offsets = [0, 32], sizes = [16, 32], strides = [1, 1]} : vector<16x96xf32> to vector<16x32xf32>
    %41 = vector.shape_cast %40 : vector<16x32xf32> to vector<2x8x32xf32>
    %42 = vector.extract_strided_slice %41 {offsets = [0, 0, 0], sizes = [2, 8, 8], strides = [1, 1, 1]} : vector<2x8x32xf32> to vector<2x8x8xf32>
    %43 = vector.extract_strided_slice %41 {offsets = [0, 0, 8], sizes = [2, 8, 8], strides = [1, 1, 1]} : vector<2x8x32xf32> to vector<2x8x8xf32>
    %44 = vector.extract_strided_slice %41 {offsets = [0, 0, 16], sizes = [2, 8, 8], strides = [1, 1, 1]} : vector<2x8x32xf32> to vector<2x8x8xf32>
    %45 = vector.extract_strided_slice %41 {offsets = [0, 0, 24], sizes = [2, 8, 8], strides = [1, 1, 1]} : vector<2x8x32xf32> to vector<2x8x8xf32>
    %46 = tpu.concatenate %42, %43, %44, %45 in 0 : vector<2x8x8xf32>, vector<2x8x8xf32>, vector<2x8x8xf32>, vector<2x8x8xf32> -> vector<8x8x8xf32>
    %47 = vector.extract_strided_slice %32 {offsets = [0, 64], sizes = [16, 32], strides = [1, 1]} : vector<16x96xf32> to vector<16x32xf32>
    %48 = vector.shape_cast %47 : vector<16x32xf32> to vector<2x8x32xf32>
    %49 = vector.extract_strided_slice %48 {offsets = [0, 0, 0], sizes = [2, 8, 8], strides = [1, 1, 1]} : vector<2x8x32xf32> to vector<2x8x8xf32>
    %50 = vector.extract_strided_slice %48 {offsets = [0, 0, 8], sizes = [2, 8, 8], strides = [1, 1, 1]} : vector<2x8x32xf32> to vector<2x8x8xf32>
    %51 = vector.extract_strided_slice %48 {offsets = [0, 0, 16], sizes = [2, 8, 8], strides = [1, 1, 1]} : vector<2x8x32xf32> to vector<2x8x8xf32>
    %52 = vector.extract_strided_slice %48 {offsets = [0, 0, 24], sizes = [2, 8, 8], strides = [1, 1, 1]} : vector<2x8x32xf32> to vector<2x8x8xf32>
    %53 = tpu.concatenate %49, %50, %51, %52 in 0 : vector<2x8x8xf32>, vector<2x8x8xf32>, vector<2x8x8xf32>, vector<2x8x8xf32> -> vector<8x8x8xf32>
    %c0_16 = arith.constant 0 : index
    %c0_17 = arith.constant 0 : index
    %c0_18 = arith.constant 0 : index
    %54 = vector.load %arg1[%c0_16, %c0_17, %c0_18] : memref<2x8x8xf32, #tpu.memory_space<vmem>>, vector<1x8x8xf32>
    %55 = vector.shape_cast %54 : vector<1x8x8xf32> to vector<8x8xf32>
    %c1_19 = arith.constant 1 : index
    %c0_20 = arith.constant 0 : index
    %c0_21 = arith.constant 0 : index
    %56 = vector.load %arg1[%c1_19, %c0_20, %c0_21] : memref<2x8x8xf32, #tpu.memory_space<vmem>>, vector<1x8x8xf32>
    %57 = vector.shape_cast %56 : vector<1x8x8xf32> to vector<8x8xf32>
    %58 = vector.extract_strided_slice %39 {offsets = [0, 0, 4], sizes = [8, 8, 4], strides = [1, 1, 1]} : vector<8x8x8xf32> to vector<8x8x4xf32>
    %59 = vector.extract_strided_slice %39 {offsets = [0, 0, 0], sizes = [8, 8, 4], strides = [1, 1, 1]} : vector<8x8x8xf32> to vector<8x8x4xf32>
    %60 = tpu.concatenate %58, %59 in 2 : vector<8x8x4xf32>, vector<8x8x4xf32> -> vector<8x8x8xf32>
    %61 = vector.shape_cast %55 : vector<8x8xf32> to vector<1x8x8xf32>
    %62 = vector.broadcast %61 : vector<1x8x8xf32> to vector<8x8x8xf32>
    %63 = arith.mulf %39, %62 : vector<8x8x8xf32>
    %64 = vector.shape_cast %57 : vector<8x8xf32> to vector<1x8x8xf32>
    %65 = vector.broadcast %64 : vector<1x8x8xf32> to vector<8x8x8xf32>
    %66 = arith.mulf %60, %65 : vector<8x8x8xf32>
    %67 = arith.addf %63, %66 : vector<8x8x8xf32>
    %68 = vector.extract_strided_slice %46 {offsets = [0, 0, 4], sizes = [8, 8, 4], strides = [1, 1, 1]} : vector<8x8x8xf32> to vector<8x8x4xf32>
    %69 = vector.extract_strided_slice %46 {offsets = [0, 0, 0], sizes = [8, 8, 4], strides = [1, 1, 1]} : vector<8x8x8xf32> to vector<8x8x4xf32>
    %70 = tpu.concatenate %68, %69 in 2 : vector<8x8x4xf32>, vector<8x8x4xf32> -> vector<8x8x8xf32>
    %71 = vector.shape_cast %55 : vector<8x8xf32> to vector<1x8x8xf32>
    %72 = vector.broadcast %71 : vector<1x8x8xf32> to vector<8x8x8xf32>
    %73 = arith.mulf %46, %72 : vector<8x8x8xf32>
    %74 = vector.shape_cast %57 : vector<8x8xf32> to vector<1x8x8xf32>
    %75 = vector.broadcast %74 : vector<1x8x8xf32> to vector<8x8x8xf32>
    %76 = arith.mulf %70, %75 : vector<8x8x8xf32>
    %77 = arith.addf %73, %76 : vector<8x8x8xf32>
    "tpu.trace_start"() <{level = 10 : i32, message = "bqd,bkd->bqk"}> : () -> ()
    %cst_22 = arith.constant dense<0.000000e+00> : vector<8x8x8xf32>
    %78 = tpu.matmul %67, %77, %cst_22 {dimension_numbers = #tpu.dot_dimension_numbers<[2], [2], [1], [1], [0, 0, 0, 1, 1, 1], [0], [0]>} : vector<8x8x8xf32>, vector<8x8x8xf32>, vector<8x8x8xf32> -> vector<8x8x8xf32>
    "tpu.trace_stop"() : () -> ()
    %cst_23 = arith.constant dense<0xFF800000> : vector<8x8xf32>
    %79 = vector.multi_reduction <maximumf>, %78, %cst_23 [2] : vector<8x8x8xf32> to vector<8x8xf32>
    %80 = vector.shape_cast %79 : vector<8x8xf32> to vector<8x8x1xf32>
    %81 = vector.broadcast %80 : vector<8x8x1xf32> to vector<8x8x8xf32>
    %82 = arith.subf %78, %81 : vector<8x8x8xf32>
    %83 = math.exp %82 : vector<8x8x8xf32>
    %cst_24 = arith.constant dense<0.000000e+00> : vector<8x8xf32>
    %84 = vector.multi_reduction <add>, %83, %cst_24 [2] : vector<8x8x8xf32> to vector<8x8xf32>
    %85 = vector.shape_cast %84 : vector<8x8xf32> to vector<8x8x1xf32>
    %86 = tpu.reciprocal %85 : vector<8x8x1xf32> -> vector<8x8x1xf32>
    %87 = vector.broadcast %86 : vector<8x8x1xf32> to vector<8x8x8xf32>
    %88 = arith.mulf %83, %87 : vector<8x8x8xf32>
    "tpu.trace_start"() <{level = 10 : i32, message = "bqk,bkd->bqd"}> : () -> ()
    %cst_25 = arith.constant dense<0.000000e+00> : vector<8x8x8xf32>
    %89 = tpu.matmul %88, %53, %cst_25 {dimension_numbers = #tpu.dot_dimension_numbers<[2], [1], [1], [2], [0, 0, 0, 1, 1, 2], [0], [0]>} : vector<8x8x8xf32>, vector<8x8x8xf32>, vector<8x8x8xf32> -> vector<8x8x8xf32>
    "tpu.trace_stop"() : () -> ()
    %90 = vector.extract_strided_slice %89 {offsets = [0, 0, 0], sizes = [2, 8, 8], strides = [1, 1, 1]} : vector<8x8x8xf32> to vector<2x8x8xf32>
    %91 = vector.extract_strided_slice %89 {offsets = [2, 0, 0], sizes = [2, 8, 8], strides = [1, 1, 1]} : vector<8x8x8xf32> to vector<2x8x8xf32>
    %92 = vector.extract_strided_slice %89 {offsets = [4, 0, 0], sizes = [2, 8, 8], strides = [1, 1, 1]} : vector<8x8x8xf32> to vector<2x8x8xf32>
    %93 = vector.extract_strided_slice %89 {offsets = [6, 0, 0], sizes = [2, 8, 8], strides = [1, 1, 1]} : vector<8x8x8xf32> to vector<2x8x8xf32>
    %94 = tpu.concatenate %90, %91, %92, %93 in 2 : vector<2x8x8xf32>, vector<2x8x8xf32>, vector<2x8x8xf32>, vector<2x8x8xf32> -> vector<2x8x32xf32>
    %95 = vector.shape_cast %94 : vector<2x8x32xf32> to vector<16x32xf32>
    %c0_26 = arith.constant 0 : index
    %c96 = arith.constant 96 : index
    %96 = vector.load %arg2[%c0_26, %c96] : memref<32x192xf32, #tpu.memory_space<vmem>>, vector<32x32xf32>
    %cst_27 = arith.constant dense<0.000000e+00> : vector<16x32xf32>
    %97 = tpu.matmul %95, %96, %cst_27 {dimension_numbers = #tpu.dot_dimension_numbers<[1], [0], [0], [1], [0, 0, 1, 1], [], []>} : vector<16x32xf32>, vector<32x32xf32>, vector<16x32xf32> -> vector<16x32xf32>
    %c0_28 = arith.constant 0 : index
    %c96_29 = arith.constant 96 : index
    %98 = vector.load %arg3[%c0_28, %c96_29] : memref<1x192xf32, #tpu.memory_space<vmem>>, vector<1x32xf32>
    %99 = vector.broadcast %98 : vector<1x32xf32> to vector<16x32xf32>
    %100 = arith.addf %97, %99 : vector<16x32xf32>
    %101 = arith.addf %100, %0 : vector<16x32xf32>
    %cst_30 = arith.constant dense<0.000000e+00> : vector<16xf32>
    %102 = vector.multi_reduction <add>, %101, %cst_30 [1] : vector<16x32xf32> to vector<16xf32>
    %103 = vector.shape_cast %102 : vector<16xf32> to vector<16x1xf32>
    %cst_31 = arith.constant 3.200000e+01 : f32
    %104 = vector.broadcast %cst_31 : f32 to vector<16x1xf32>
    %105 = arith.divf %103, %104 : vector<16x1xf32>
    %106 = vector.broadcast %105 : vector<16x1xf32> to vector<16x32xf32>
    %107 = arith.subf %101, %106 : vector<16x32xf32>
    %108 = arith.mulf %107, %107 : vector<16x32xf32>
    %cst_32 = arith.constant dense<0.000000e+00> : vector<16xf32>
    %109 = vector.multi_reduction <add>, %108, %cst_32 [1] : vector<16x32xf32> to vector<16xf32>
    %110 = vector.shape_cast %109 : vector<16xf32> to vector<16x1xf32>
    %cst_33 = arith.constant 3.200000e+01 : f32
    %111 = vector.broadcast %cst_33 : f32 to vector<16x1xf32>
    %112 = arith.divf %110, %111 : vector<16x1xf32>
    %113 = vector.broadcast %105 : vector<16x1xf32> to vector<16x32xf32>
    %114 = arith.subf %101, %113 : vector<16x32xf32>
    %cst_34 = arith.constant 9.99999974E-6 : f32
    %115 = vector.broadcast %cst_34 : f32 to vector<16x1xf32>
    %116 = arith.addf %112, %115 : vector<16x1xf32>
    %117 = math.rsqrt %116 : vector<16x1xf32>
    %118 = vector.broadcast %117 : vector<16x1xf32> to vector<16x32xf32>
    %119 = arith.mulf %114, %118 : vector<16x32xf32>
    %120 = vector.broadcast %3 : vector<1x32xf32> to vector<16x32xf32>
    %121 = arith.mulf %119, %120 : vector<16x32xf32>
    %122 = vector.broadcast %4 : vector<1x32xf32> to vector<16x32xf32>
    %123 = arith.addf %121, %122 : vector<16x32xf32>
    %c0_35 = arith.constant 0 : index
    %c128 = arith.constant 128 : index
    %124 = vector.load %arg2[%c0_35, %c128] : memref<32x192xf32, #tpu.memory_space<vmem>>, vector<32x64xf32>
    %cst_36 = arith.constant dense<0.000000e+00> : vector<16x64xf32>
    %125 = tpu.matmul %123, %124, %cst_36 {dimension_numbers = #tpu.dot_dimension_numbers<[1], [0], [0], [1], [0, 0, 1, 1], [], []>} : vector<16x32xf32>, vector<32x64xf32>, vector<16x64xf32> -> vector<16x64xf32>
    %c0_37 = arith.constant 0 : index
    %c128_38 = arith.constant 128 : index
    %126 = vector.load %arg3[%c0_37, %c128_38] : memref<1x192xf32, #tpu.memory_space<vmem>>, vector<1x64xf32>
    %127 = vector.broadcast %126 : vector<1x64xf32> to vector<16x64xf32>
    %128 = arith.addf %125, %127 : vector<16x64xf32>
    %cst_39 = arith.constant 5.000000e-01 : f32
    %129 = vector.broadcast %cst_39 : f32 to vector<16x64xf32>
    %130 = arith.mulf %128, %129 : vector<16x64xf32>
    %cst_40 = arith.constant 1.41421354 : f32
    %131 = vector.broadcast %cst_40 : f32 to vector<16x64xf32>
    %132 = arith.divf %128, %131 : vector<16x64xf32>
    %133 = math.erf %132 : vector<16x64xf32>
    %cst_41 = arith.constant 1.000000e+00 : f32
    %134 = vector.broadcast %cst_41 : f32 to vector<16x64xf32>
    %135 = arith.addf %134, %133 : vector<16x64xf32>
    %136 = arith.mulf %130, %135 : vector<16x64xf32>
    %c0_42 = arith.constant 0 : index
    %c0_43 = arith.constant 0 : index
    %137 = vector.load %arg4[%c0_42, %c0_43] : memref<64x32xf32, #tpu.memory_space<vmem>>, vector<64x32xf32>
    %cst_44 = arith.constant dense<0.000000e+00> : vector<16x32xf32>
    %138 = tpu.matmul %136, %137, %cst_44 {dimension_numbers = #tpu.dot_dimension_numbers<[1], [0], [0], [1], [0, 0, 1, 1], [], []>} : vector<16x64xf32>, vector<64x32xf32>, vector<16x32xf32> -> vector<16x32xf32>
    %139 = vector.broadcast %5 : vector<1x32xf32> to vector<16x32xf32>
    %140 = arith.addf %138, %139 : vector<16x32xf32>
    %141 = arith.addf %140, %101 : vector<16x32xf32>
    %c0_45 = arith.constant 0 : index
    %c0_46 = arith.constant 0 : index
    %142 = vector.load %arg6[%c0_45, %c0_46] : memref<16x32xf32, #tpu.memory_space<vmem>>, vector<16x32xf32>
    tpu.vector_store %arg6[%c0_45, %c0_46], %141 {strides = array<i32>} : memref<16x32xf32, #tpu.memory_space<vmem>>, vector<16x32xf32>,
    return
  }
}

</mosaic_0001>

<llo_original>
// kernel: esm_layer_pallas.1
$region0: #{esm_layer_pallas.1}
  #allocation0 [shape = 'u32[]', space=smem, size = 0x4, offset = 0x4, fixed_abs, tag = 'smem constant byte address 0x4 - core index']
  #allocation1 [shape = 'u32[72,128]{1,0:T(1,128)}', space=vmem, size = 0x9000, scoped, tag = 'internal scratch']
  %s0 = inlined_call_operand.vmem [shape: f32[16,32], index: 0, kind: input, shape index: {}]
  %s1 = inlined_call_operand.vmem [shape: f32[2,8,8], index: 1, kind: input, shape index: {}]
  %s2 = inlined_call_operand.vmem [shape: f32[32,192], index: 2, kind: input, shape index: {}]
  %s3 = inlined_call_operand.hbm [shape: f32[1,192], index: 3, kind: input, shape index: {}]
  %s4 = inlined_call_operand.vmem [shape: f32[64,32], index: 4, kind: input, shape index: {}]
  %s5 = inlined_call_operand.hbm [shape: f32[5,32], index: 5, kind: input, shape index: {}]
  %s6 = inlined_call_operand.hbm [shape: f32[16,32], index: 6, kind: output, shape index: {}]
  %s7 = sld [smem:[#allocation0]]
  $region42: #{esm_layer_pallas.1} parent=0
    _
  %s9 = ssub.s32 1, %s7
  %s10 = scalar_select 0, %s9, %s7
  $region1: #{esm_layer_pallas.1} parent=0
    #allocation2 [shape = 'u8[1024]{0}', space=vmem, size = 0x400, scoped, tag = 'input window, operand 3, single buffered']
    #allocation3 [shape = 's32[1]{0}', space=sflag, size = 0x4, scoped, tag = 'scoped memory for esm_layer_pallas.1']
    #allocation4 [shape = 's32[1]{0}', space=sflag, size = 0x4, scoped, tag = 'scoped memory for esm_layer_pallas.1']
    #allocation5 [shape = 'u8[4096]{0}', space=vmem, size = 0x1000, scoped, tag = 'input window, operand 5, single buffered']
    #allocation6 [shape = 's32[1]{0}', space=sflag, size = 0x4, scoped, tag = 'scoped memory for esm_layer_pallas.1']
    #allocation7 [shape = 'u8[8192]{0}', space=vmem, size = 0x2000, scoped, tag = 'output window, operand 0, single buffered']
    %11 = vsyncpa [#allocation3], 0
    %12 = vsyncpa [#allocation6], 0
    %13 = vsyncpa [#allocation4], 0
    // Predicated region
    $region2: #{esm_layer_pallas.1} parent=1 // pred_check
      _
    $region3: #{esm_layer_pallas.1} parent=1 // pred_check_branch
      %15 = sbr.rel (0) target = $region5
    $region4: #{esm_layer_pallas.1} parent=1 // pred_region
      _
    $region5: #{esm_layer_pallas.1} parent=1 // pred_fallthru
      _
    // Predicated region
    $region6: #{esm_layer_pallas.1} parent=1 // pred_check
      _
    $region7: #{esm_layer_pallas.1} parent=1 // pred_check_branch
      %17 = sbr.rel (0) target = $region9
    $region8: #{esm_layer_pallas.1} parent=1 // pred_region
      _
    $region9: #{esm_layer_pallas.1} parent=1 // pred_fallthru
      _
    // Predicated region
    $region10: #{esm_layer_pallas.1} parent=1 // pred_check
      _
    $region11: #{esm_layer_pallas.1} parent=1 // pred_check_branch
      %19 = sbr.rel (0) target = $region13
    $region12: #{esm_layer_pallas.1} parent=1 // pred_region
      _
    $region13: #{esm_layer_pallas.1} parent=1 // pred_fallthru
      _
    // Predicated region
    $region14: #{esm_layer_pallas.1} parent=1 // pred_check
      _
    $region15: #{esm_layer_pallas.1} parent=1 // pred_check_branch
      %21 = sbr.rel (0) target = $region17
    $region16: #{esm_layer_pallas.1} parent=1 // pred_region
      %23 = vsyncadd [#allocation3], 0
      %s25 = sshll.u32 %s3, 4
      %s26 = int_to_ptr.hbm [resolvable:$true] %s25
      %s27 = sshll.u32 [#allocation2], 4
      %s28 = int_to_ptr.vmem [resolvable:$true] %s27
      %30 = dma.hbm_to_vmem [thread:$0]  %s26, 32, %s28, [#allocation3]
    $region17: #{esm_layer_pallas.1} parent=1 // pred_fallthru
      _
    // Predicated region
    $region18: #{esm_layer_pallas.1} parent=1 // pred_check
      _
    $region19: #{esm_layer_pallas.1} parent=1 // pred_check_branch
      %32 = sbr.rel (0) target = $region21
    $region20: #{esm_layer_pallas.1} parent=1 // pred_region
      _
    $region21: #{esm_layer_pallas.1} parent=1 // pred_fallthru
      _
    // Predicated region
    $region22: #{esm_layer_pallas.1} parent=1 // pred_check
      _
    $region23: #{esm_layer_pallas.1} parent=1 // pred_check_branch
      %34 = sbr.rel (0) target = $region25
    $region24: #{esm_layer_pallas.1} parent=1 // pred_region
      %36 = vsyncadd [#allocation6], 0
      %s38 = sshll.u32 %s5, 4
      %s39 = int_to_ptr.hbm [resolvable:$true] %s38
      %s40 = sshll.u32 [#allocation5], 4
      %s41 = int_to_ptr.vmem [resolvable:$true] %s40
      %43 = dma.hbm_to_vmem [thread:$0]  %s39, 128, %s41, [#allocation6]
    $region25: #{esm_layer_pallas.1} parent=1 // pred_fallthru
      _
    // Predicated region
    $region26: #{esm_layer_pallas.1} parent=1 // pred_check
      _
    $region27: #{esm_layer_pallas.1} parent=1 // pred_check_branch
      %45 = sbr.rel (0) target = $region29
    $region28: #{esm_layer_pallas.1} parent=1 // pred_region
      %47 = dma.done [#allocation3], 32
    $region29: #{esm_layer_pallas.1} parent=1 // pred_fallthru
      _
    // Predicated region
    $region30: #{esm_layer_pallas.1} parent=1 // pred_check
      _
    $region31: #{esm_layer_pallas.1} parent=1 // pred_check_branch
      %49 = sbr.rel (0) target = $region33
    $region32: #{esm_layer_pallas.1} parent=1 // pred_region
      %51 = dma.done [#allocation6], 128
    $region33: #{esm_layer_pallas.1} parent=1 // pred_fallthru
      _
    %v52 = vld [vmem:[%s0] sm:$0xff]
    %v53 = vld [vmem:[%s0 + $0x8] sm:$0xff]
    %v54 = vld [vmem:[#allocation5] sm:$0x1]
    %v55 = vld [vmem:[#allocation5 + $0x1] sm:$0x1]
    %v56 = vld [vmem:[#allocation5 + $0x2] sm:$0x1]
    %v57 = vld [vmem:[#allocation5 + $0x3] sm:$0x1]
    %v58 = vld [vmem:[#allocation5 + $0x4] sm:$0x1]
    %vm59 = vcmask 261120
    %v60 = vsel %vm59, %v52, 0.0
    %61 = vadd.xlane.f32.xlu0 %v60
    %v62 = vpop.xlane.xlu0 %61
    %v63 = vsel %vm59, %v53, 0.0
    %64 = vadd.xlane.f32.xlu0 %v63
    %v65 = vpop.xlane.xlu0 %64
    %v66 = vrcp.pop 32.0
    %v67 = vmul.f32 32.0, %v66
    %v68 = vsub.f32 1.0, %v67
    %v69 = vmul.f32 %v66, %v68
    %v70 = vadd.f32 %v66, %v69
    %vm71 = vweird.f32 %v66
    %v72 = vsel %vm71, %v66, %v70
    %v73 = vmul.f32 %v62, %v72
    %v74 = vmul.f32 %v65, %v72
    %v75 = vsub.f32 %v52, %v73
    %v76 = vsub.f32 %v53, %v74
    %v77 = vmul.f32 %v75, %v75
    %v78 = vmul.f32 %v76, %v76
    %v79 = vsel %vm59, %v77, 0.0
    %80 = vadd.xlane.f32.xlu0 %v79
    %v81 = vpop.xlane.xlu0 %80
    %v82 = vsel %vm59, %v78, 0.0
    %83 = vadd.xlane.f32.xlu0 %v82
    %v84 = vpop.xlane.xlu0 %83
    %v85 = vmul.f32 %v81, %v72
    %v86 = vmul.f32 %v84, %v72
    %v87 = vadd.f32 %v85, 1e-05
    %v88 = vadd.f32 %v86, 1e-05
    %v89 = vrsqrt.pop %v87
    %v90 = vmul.f32 %v89, %v87
    %v91 = vmul.f32 %v90, %v89
    %v92 = vmul.f32 0.5, %v91
    %v93 = vsub.f32 1.5, %v92
    %v94 = vmul.f32 %v89, %v93
    %vm95 = vweird.f32 %v87
    %vm96 = vweird.f32 %v89
    %vm97 = vmor %vm95, %vm96
    %v98 = vsel %vm97, %v89, %v94
    %v99 = vrsqrt.pop %v88
    %v100 = vmul.f32 %v99, %v88
    %v101 = vmul.f32 %v100, %v99
    %v102 = vmul.f32 0.5, %v101
    %v103 = vsub.f32 1.5, %v102
    %v104 = vmul.f32 %v99, %v103
    %vm105 = vweird.f32 %v88
    %vm106 = vweird.f32 %v99
    %vm107 = vmor %vm105, %vm106
    %v108 = vsel %vm107, %v99, %v104
    %v109 = vmul.f32 %v75, %v98
    %v110 = vmul.f32 %v76, %v108
    %v111 = vperm.slane %v54, 0
    %v112 = vmul.f32 %v109, %v111
    %v113 = vmul.f32 %v110, %v111
    %v114 = vperm.slane %v55, 0
    %v115 = vadd.f32 %v112, %v114
    %v116 = vadd.f32 %v113, %v114
    %v117 = vld [vmem:[%s2] sm:$0xff]
    %v118 = vld [vmem:[%s2 + $0x10] sm:$0xff]
    %v119 = vld [vmem:[%s2 + $0x20] sm:$0xff]
    %v120 = vld [vmem:[%s2 + $0x30] sm:$0xff]
    %v121 = vld [vmem:[#allocation2] sm:$0x1]
    %v123 = vperm.slane %v121, 0
    %v126 = vsel %vm59, %v115, 0
    %v129 = vsel %vm59, %v116, 0
    %131 = vmatpush.msra.mxu0 0.0
    %132 = vmatpush.msra.mxu0 0.0
    %133 = vmatpush.msra.mxu0 0.0
    %134 = vmatpush.msra.mxu0 0.0
    %135 = vmatpush.msra.mxu0 0.0
    %136 = vmatpush.msra.mxu0 0.0
    %137 = vmatpush.msra.mxu0 0.0
    %138 = vmatpush.msra.mxu0 0.0
    %139 = vmatpush.msra.mxu0 0.0
    %140 = vmatpush.msra.mxu0 0.0
    %141 = vmatpush.msra.mxu0 0.0
    %142 = vmatpush.msra.mxu0 0.0
    %143 = vmatpush.msra.mxu0 %v120
    %144 = vmatpush.msra.mxu0 %v119
    %145 = vmatpush.msra.mxu0 %v118
    %146 = vmatpush.msra.mxu0 %v117
    %147 = vmatmul.f32.gmra.mxu0 %v126
    %v148 = vpop.f32.mrf.mxu0
    %v149 = vadd.f32 %v123, %v148
    %150 = vmatmul.f32.gmra.mxu0 %v129
    %v151 = vpop.f32.mrf.mxu0
    %v152 = vadd.f32 %v123, %v151
    %153 = vdwg.mxu0
    %156 = vrot.lane.b32.xlu0 %v149, 120
    %v157 = vpop.permute.xlu0 %156
    %158 = vrot.lane.b32.xlu0 %v152, 120
    %v159 = vpop.permute.xlu0 %158
    %162 = vrot.lane.b32.xlu0 %v149, 112
    %v163 = vpop.permute.xlu0 %162
    %164 = vrot.lane.b32.xlu0 %v152, 112
    %v165 = vpop.permute.xlu0 %164
    %168 = vrot.lane.b32.xlu0 %v149, 104
    %v169 = vpop.permute.xlu0 %168
    %170 = vrot.lane.b32.xlu0 %v152, 104
    %v171 = vpop.permute.xlu0 %170
    %v174 = vld [vmem:[%s1] sm:$0xff]
    %s175 = scalar_lea.vmem %s1, 8
    %v176 = vld [vmem:[%s175] sm:$0xff]
    %177 = vrot.lane.b32.xlu0 %v149, 124
    %v178 = vpop.permute.xlu0 %177
    %179 = vrot.lane.b32.xlu0 %v152, 124
    %v180 = vpop.permute.xlu0 %179
    %181 = vrot.lane.b32.xlu0 %v157, 124
    %v182 = vpop.permute.xlu0 %181
    %183 = vrot.lane.b32.xlu0 %v159, 124
    %v184 = vpop.permute.xlu0 %183
    %185 = vrot.lane.b32.xlu0 %v163, 124
    %v186 = vpop.permute.xlu0 %185
    %187 = vrot.lane.b32.xlu0 %v165, 124
    %v188 = vpop.permute.xlu0 %187
    %189 = vrot.lane.b32.xlu0 %v169, 124
    %v190 = vpop.permute.xlu0 %189
    %191 = vrot.lane.b32.xlu0 %v171, 124
    %v192 = vpop.permute.xlu0 %191
    %201 = vrot.lane.b32.xlu0 %v149, 4
    %v202 = vpop.permute.xlu0 %201
    %203 = vrot.lane.b32.xlu0 %v152, 4
    %v204 = vpop.permute.xlu0 %203
    %205 = vrot.lane.b32.xlu0 %v157, 4
    %v206 = vpop.permute.xlu0 %205
    %207 = vrot.lane.b32.xlu0 %v159, 4
    %v208 = vpop.permute.xlu0 %207
    %209 = vrot.lane.b32.xlu0 %v163, 4
    %v210 = vpop.permute.xlu0 %209
    %211 = vrot.lane.b32.xlu0 %v165, 4
    %v212 = vpop.permute.xlu0 %211
    %213 = vrot.lane.b32.xlu0 %v169, 4
    %v214 = vpop.permute.xlu0 %213
    %215 = vrot.lane.b32.xlu0 %v171, 4
    %v216 = vpop.permute.xlu0 %215
    %vm225 = vcmask 31744
    %v226 = vsel %vm225, %v178, %v202
    %v227 = vsel %vm225, %v180, %v204
    %v228 = vsel %vm225, %v182, %v206
    %v229 = vsel %vm225, %v184, %v208
    %v230 = vsel %vm225, %v186, %v210
    %v231 = vsel %vm225, %v188, %v212
    %v232 = vsel %vm225, %v190, %v214
    %v233 = vsel %vm225, %v192, %v216
    %v234 = vmul.f32 %v149, %v174
    %v235 = vmul.f32 %v152, %v174
    %v236 = vmul.f32 %v157, %v174
    %v237 = vmul.f32 %v159, %v174
    %v238 = vmul.f32 %v163, %v174
    %v239 = vmul.f32 %v165, %v174
    %v240 = vmul.f32 %v169, %v174
    %v241 = vmul.f32 %v171, %v174
    %v242 = vmul.f32 %v226, %v176
    %v243 = vmul.f32 %v227, %v176
    %v244 = vmul.f32 %v228, %v176
    %v245 = vmul.f32 %v229, %v176
    %v246 = vmul.f32 %v230, %v176
    %v247 = vmul.f32 %v231, %v176
    %v248 = vmul.f32 %v232, %v176
    %v249 = vmul.f32 %v233, %v176
    %v250 = vadd.f32 %v234, %v242
    %v251 = vadd.f32 %v235, %v243
    %v252 = vadd.f32 %v236, %v244
    %v253 = vadd.f32 %v237, %v245
    %v254 = vadd.f32 %v238, %v246
    %v255 = vadd.f32 %v239, %v247
    %v256 = vadd.f32 %v240, %v248
    %v257 = vadd.f32 %v241, %v249
    %258 = vrot.lane.b32.xlu0 %v149, 92
    %v259 = vpop.permute.xlu0 %258
    %260 = vrot.lane.b32.xlu0 %v152, 92
    %v261 = vpop.permute.xlu0 %260
    %262 = vrot.lane.b32.xlu0 %v157, 92
    %v263 = vpop.permute.xlu0 %262
    %264 = vrot.lane.b32.xlu0 %v159, 92
    %v265 = vpop.permute.xlu0 %264
    %266 = vrot.lane.b32.xlu0 %v163, 92
    %v267 = vpop.permute.xlu0 %266
    %268 = vrot.lane.b32.xlu0 %v165, 92
    %v269 = vpop.permute.xlu0 %268
    %270 = vrot.lane.b32.xlu0 %v169, 92
    %v271 = vpop.permute.xlu0 %270
    %272 = vrot.lane.b32.xlu0 %v171, 92
    %v273 = vpop.permute.xlu0 %272
    %282 = vrot.lane.b32.xlu0 %v149, 100
    %v283 = vpop.permute.xlu0 %282
    %284 = vrot.lane.b32.xlu0 %v152, 100
    %v285 = vpop.permute.xlu0 %284
    %286 = vrot.lane.b32.xlu0 %v157, 100
    %v287 = vpop.permute.xlu0 %286
    %288 = vrot.lane.b32.xlu0 %v159, 100
    %v289 = vpop.permute.xlu0 %288
    %290 = vrot.lane.b32.xlu0 %v163, 100
    %v291 = vpop.permute.xlu0 %290
    %292 = vrot.lane.b32.xlu0 %v165, 100
    %v293 = vpop.permute.xlu0 %292
    %294 = vrot.lane.b32.xlu0 %v169, 100
    %v295 = vpop.permute.xlu0 %294
    %296 = vrot.lane.b32.xlu0 %v171, 100
    %v297 = vpop.permute.xlu0 %296
    %v306 = vsel %vm225, %v259, %v283
    %v307 = vsel %vm225, %v261, %v285
    %v308 = vsel %vm225, %v263, %v287
    %v309 = vsel %vm225, %v265, %v289
    %v310 = vsel %vm225, %v267, %v291
    %v311 = vsel %vm225, %v269, %v293
    %v312 = vsel %vm225, %v271, %v295
    %v313 = vsel %vm225, %v273, %v297
    %315 = vrot.lane.b32.xlu0 %v174, 32
    %v316 = vpop.permute.xlu0 %315
    %v318 = vmul.f32 %v149, %v316
    %v319 = vmul.f32 %v152, %v316
    %v320 = vmul.f32 %v157, %v316
    %v321 = vmul.f32 %v159, %v316
    %v322 = vmul.f32 %v163, %v316
    %v323 = vmul.f32 %v165, %v316
    %v324 = vmul.f32 %v169, %v316
    %v325 = vmul.f32 %v171, %v316
    %v326 = vmul.f32 %v306, %v176
    %v327 = vmul.f32 %v307, %v176
    %v328 = vmul.f32 %v308, %v176
    %v329 = vmul.f32 %v309, %v176
    %v330 = vmul.f32 %v310, %v176
    %v331 = vmul.f32 %v311, %v176
    %v332 = vmul.f32 %v312, %v176
    %v333 = vmul.f32 %v313, %v176
    %342 = vrot.lane.b32.xlu0 %v326, 32
    %v343 = vpop.permute.xlu0 %342
    %344 = vrot.lane.b32.xlu0 %v327, 32
    %v345 = vpop.permute.xlu0 %344
    %346 = vrot.lane.b32.xlu0 %v328, 32
    %v347 = vpop.permute.xlu0 %346
    %348 = vrot.lane.b32.xlu0 %v329, 32
    %v349 = vpop.permute.xlu0 %348
    %350 = vrot.lane.b32.xlu0 %v330, 32
    %v351 = vpop.permute.xlu0 %350
    %352 = vrot.lane.b32.xlu0 %v331, 32
    %v353 = vpop.permute.xlu0 %352
    %354 = vrot.lane.b32.xlu0 %v332, 32
    %v355 = vpop.permute.xlu0 %354
    %356 = vrot.lane.b32.xlu0 %v333, 32
    %v357 = vpop.permute.xlu0 %356
    %v366 = vadd.f32 %v318, %v343
    %v367 = vadd.f32 %v319, %v345
    %v368 = vadd.f32 %v320, %v347
    %v369 = vadd.f32 %v321, %v349
    %v370 = vadd.f32 %v322, %v351
    %v371 = vadd.f32 %v323, %v353
    %v372 = vadd.f32 %v324, %v355
    %v373 = vadd.f32 %v325, %v357
    %375 = vrot.lane.b32.xlu0 %v366, 96
    %v376 = vpop.permute.xlu0 %375
    %vm377 = vcmask 64512
    %v379 = vsel %vm377, %v250, 0
    %v381 = vsel %vm377, %v376, 0
    %383 = vmatpush.xpose.msra.mxu0 0.0
    %384 = vmatpush.xpose.msra.mxu0 0.0
    %385 = vmatpush.xpose.msra.mxu0 0.0
    %386 = vmatpush.xpose.msra.mxu0 0.0
    %387 = vmatpush.xpose.msra.mxu0 0.0
    %388 = vmatpush.xpose.msra.mxu0 0.0
    %389 = vmatpush.xpose.msra.mxu0 0.0
    %390 = vmatpush.xpose.msra.mxu0 0.0
    %391 = vmatpush.xpose.msra.mxu0 0.0
    %392 = vmatpush.xpose.msra.mxu0 0.0
    %393 = vmatpush.xpose.msra.mxu0 0.0
    %394 = vmatpush.xpose.msra.mxu0 0.0
    %395 = vmatpush.xpose.msra.mxu0 0.0
    %396 = vmatpush.xpose.msra.mxu0 0.0
    %397 = vmatpush.xpose.msra.mxu0 0.0
    %398 = vmatpush.xpose.msra.mxu0 %v381
    %399 = vmatmul.f32.gmra.mxu0 %v379
    %v400 = vpop.f32.mrf.mxu0
    %v401 = vadd.f32 0.0, %v400
    %402 = vdwg.mxu0
    %404 = vrot.lane.b32.xlu0 %v367, 96
    %v405 = vpop.permute.xlu0 %404
    %v407 = vsel %vm377, %v251, 0
    %v409 = vsel %vm377, %v405, 0
    %411 = vmatpush.xpose.msra.mxu0 0.0
    %412 = vmatpush.xpose.msra.mxu0 0.0
    %413 = vmatpush.xpose.msra.mxu0 0.0
    %414 = vmatpush.xpose.msra.mxu0 0.0
    %415 = vmatpush.xpose.msra.mxu0 0.0
    %416 = vmatpush.xpose.msra.mxu0 0.0
    %417 = vmatpush.xpose.msra.mxu0 0.0
    %418 = vmatpush.xpose.msra.mxu0 0.0
    %419 = vmatpush.xpose.msra.mxu0 0.0
    %420 = vmatpush.xpose.msra.mxu0 0.0
    %421 = vmatpush.xpose.msra.mxu0 0.0
    %422 = vmatpush.xpose.msra.mxu0 0.0
    %423 = vmatpush.xpose.msra.mxu0 0.0
    %424 = vmatpush.xpose.msra.mxu0 0.0
    %425 = vmatpush.xpose.msra.mxu0 0.0
    %426 = vmatpush.xpose.msra.mxu0 %v409
    %427 = vmatmul.f32.gmra.mxu0 %v407
    %v428 = vpop.f32.mrf.mxu0
    %v429 = vadd.f32 0.0, %v428
    %430 = vdwg.mxu0
    %432 = vrot.lane.b32.xlu0 %v368, 96
    %v433 = vpop.permute.xlu0 %432
    %v435 = vsel %vm377, %v252, 0
    %v437 = vsel %vm377, %v433, 0
    %439 = vmatpush.xpose.msra.mxu0 0.0
    %440 = vmatpush.xpose.msra.mxu0 0.0
    %441 = vmatpush.xpose.msra.mxu0 0.0
    %442 = vmatpush.xpose.msra.mxu0 0.0
    %443 = vmatpush.xpose.msra.mxu0 0.0
    %444 = vmatpush.xpose.msra.mxu0 0.0
    %445 = vmatpush.xpose.msra.mxu0 0.0
    %446 = vmatpush.xpose.msra.mxu0 0.0
    %447 = vmatpush.xpose.msra.mxu0 0.0
    %448 = vmatpush.xpose.msra.mxu0 0.0
    %449 = vmatpush.xpose.msra.mxu0 0.0
    %450 = vmatpush.xpose.msra.mxu0 0.0
    %451 = vmatpush.xpose.msra.mxu0 0.0
    %452 = vmatpush.xpose.msra.mxu0 0.0
    %453 = vmatpush.xpose.msra.mxu0 0.0
    %454 = vmatpush.xpose.msra.mxu0 %v437
    %455 = vmatmul.f32.gmra.mxu0 %v435
    %v456 = vpop.f32.mrf.mxu0
    %v457 = vadd.f32 0.0, %v456
    %458 = vdwg.mxu0
    %460 = vrot.lane.b32.xlu0 %v369, 96
    %v461 = vpop.permute.xlu0 %460
    %v463 = vsel %vm377, %v253, 0
    %v465 = vsel %vm377, %v461, 0
    %467 = vmatpush.xpose.msra.mxu0 0.0
    %468 = vmatpush.xpose.msra.mxu0 0.0
    %469 = vmatpush.xpose.msra.mxu0 0.0
    %470 = vmatpush.xpose.msra.mxu0 0.0
    %471 = vmatpush.xpose.msra.mxu0 0.0
    %472 = vmatpush.xpose.msra.mxu0 0.0
    %473 = vmatpush.xpose.msra.mxu0 0.0
    %474 = vmatpush.xpose.msra.mxu0 0.0
    %475 = vmatpush.xpose.msra.mxu0 0.0
    %476 = vmatpush.xpose.msra.mxu0 0.0
    %477 = vmatpush.xpose.msra.mxu0 0.0
    %478 = vmatpush.xpose.msra.mxu0 0.0
    %479 = vmatpush.xpose.msra.mxu0 0.0
    %480 = vmatpush.xpose.msra.mxu0 0.0
    %481 = vmatpush.xpose.msra.mxu0 0.0
    %482 = vmatpush.xpose.msra.mxu0 %v465
    %483 = vmatmul.f32.gmra.mxu0 %v463
    %v484 = vpop.f32.mrf.mxu0
    %v485 = vadd.f32 0.0, %v484
    %486 = vdwg.mxu0
    %488 = vrot.lane.b32.xlu0 %v370, 96
    %v489 = vpop.permute.xlu0 %488
    %v491 = vsel %vm377, %v254, 0
    %v493 = vsel %vm377, %v489, 0
    %495 = vmatpush.xpose.msra.mxu0 0.0
    %496 = vmatpush.xpose.msra.mxu0 0.0
    %497 = vmatpush.xpose.msra.mxu0 0.0
    %498 = vmatpush.xpose.msra.mxu0 0.0
    %499 = vmatpush.xpose.msra.mxu0 0.0
    %500 = vmatpush.xpose.msra.mxu0 0.0
    %501 = vmatpush.xpose.msra.mxu0 0.0
    %502 = vmatpush.xpose.msra.mxu0 0.0
    %503 = vmatpush.xpose.msra.mxu0 0.0
    %504 = vmatpush.xpose.msra.mxu0 0.0
    %505 = vmatpush.xpose.msra.mxu0 0.0
    %506 = vmatpush.xpose.msra.mxu0 0.0
    %507 = vmatpush.xpose.msra.mxu0 0.0
    %508 = vmatpush.xpose.msra.mxu0 0.0
    %509 = vmatpush.xpose.msra.mxu0 0.0
    %510 = vmatpush.xpose.msra.mxu0 %v493
    %511 = vmatmul.f32.gmra.mxu0 %v491
    %v512 = vpop.f32.mrf.mxu0
    %v513 = vadd.f32 0.0, %v512
    %514 = vdwg.mxu0
    %516 = vrot.lane.b32.xlu0 %v371, 96
    %v517 = vpop.permute.xlu0 %516
    %v519 = vsel %vm377, %v255, 0
    %v521 = vsel %vm377, %v517, 0
    %523 = vmatpush.xpose.msra.mxu0 0.0
    %524 = vmatpush.xpose.msra.mxu0 0.0
    %525 = vmatpush.xpose.msra.mxu0 0.0
    %526 = vmatpush.xpose.msra.mxu0 0.0
    %527 = vmatpush.xpose.msra.mxu0 0.0
    %528 = vmatpush.xpose.msra.mxu0 0.0
    %529 = vmatpush.xpose.msra.mxu0 0.0
    %530 = vmatpush.xpose.msra.mxu0 0.0
    %531 = vmatpush.xpose.msra.mxu0 0.0
    %532 = vmatpush.xpose.msra.mxu0 0.0
    %533 = vmatpush.xpose.msra.mxu0 0.0
    %534 = vmatpush.xpose.msra.mxu0 0.0
    %535 = vmatpush.xpose.msra.mxu0 0.0
    %536 = vmatpush.xpose.msra.mxu0 0.0
    %537 = vmatpush.xpose.msra.mxu0 0.0
    %538 = vmatpush.xpose.msra.mxu0 %v521
    %539 = vmatmul.f32.gmra.mxu0 %v519
    %v540 = vpop.f32.mrf.mxu0
    %v541 = vadd.f32 0.0, %v540
    %542 = vdwg.mxu0
    %544 = vrot.lane.b32.xlu0 %v372, 96
    %v545 = vpop.permute.xlu0 %544
    %v547 = vsel %vm377, %v256, 0
    %v549 = vsel %vm377, %v545, 0
    %551 = vmatpush.xpose.msra.mxu0 0.0
    %552 = vmatpush.xpose.msra.mxu0 0.0
    %553 = vmatpush.xpose.msra.mxu0 0.0
    %554 = vmatpush.xpose.msra.mxu0 0.0
    %555 = vmatpush.xpose.msra.mxu0 0.0
    %556 = vmatpush.xpose.msra.mxu0 0.0
    %557 = vmatpush.xpose.msra.mxu0 0.0
    %558 = vmatpush.xpose.msra.mxu0 0.0
    %559 = vmatpush.xpose.msra.mxu0 0.0
    %560 = vmatpush.xpose.msra.mxu0 0.0
    %561 = vmatpush.xpose.msra.mxu0 0.0
    %562 = vmatpush.xpose.msra.mxu0 0.0
    %563 = vmatpush.xpose.msra.mxu0 0.0
    %564 = vmatpush.xpose.msra.mxu0 0.0
    %565 = vmatpush.xpose.msra.mxu0 0.0
    %566 = vmatpush.xpose.msra.mxu0 %v549
    %567 = vmatmul.f32.gmra.mxu0 %v547
    %v568 = vpop.f32.mrf.mxu0
    %v569 = vadd.f32 0.0, %v568
    %570 = vdwg.mxu0
    %572 = vrot.lane.b32.xlu0 %v373, 96
    %v573 = vpop.permute.xlu0 %572
    %v575 = vsel %vm377, %v257, 0
    %v577 = vsel %vm377, %v573, 0
    %579 = vmatpush.xpose.msra.mxu0 0.0
    %580 = vmatpush.xpose.msra.mxu0 0.0
    %581 = vmatpush.xpose.msra.mxu0 0.0
    %582 = vmatpush.xpose.msra.mxu0 0.0
    %583 = vmatpush.xpose.msra.mxu0 0.0
    %584 = vmatpush.xpose.msra.mxu0 0.0
    %585 = vmatpush.xpose.msra.mxu0 0.0
    %586 = vmatpush.xpose.msra.mxu0 0.0
    %587 = vmatpush.xpose.msra.mxu0 0.0
    %588 = vmatpush.xpose.msra.mxu0 0.0
    %589 = vmatpush.xpose.msra.mxu0 0.0
    %590 = vmatpush.xpose.msra.mxu0 0.0
    %591 = vmatpush.xpose.msra.mxu0 0.0
    %592 = vmatpush.xpose.msra.mxu0 0.0
    %593 = vmatpush.xpose.msra.mxu0 0.0
    %594 = vmatpush.xpose.msra.mxu0 %v577
    %595 = vmatmul.f32.gmra.mxu0 %v575
    %v596 = vpop.f32.mrf.mxu0
    %v597 = vadd.f32 0.0, %v596
    %598 = vdwg.mxu0
    %v599 = vsel %vm377, %v401, -inf
    %600 = vmax.xlane.f32.xlu0 %v599
    %v601 = vpop.xlane.xlu0 %600
    %v602 = vsel %vm377, %v429, -inf
    %603 = vmax.xlane.f32.xlu0 %v602
    %v604 = vpop.xlane.xlu0 %603
    %v605 = vsel %vm377, %v457, -inf
    %606 = vmax.xlane.f32.xlu0 %v605
    %v607 = vpop.xlane.xlu0 %606
    %v608 = vsel %vm377, %v485, -inf
    %609 = vmax.xlane.f32.xlu0 %v608
    %v610 = vpop.xlane.xlu0 %609
    %v611 = vsel %vm377, %v513, -inf
    %612 = vmax.xlane.f32.xlu0 %v611
    %v613 = vpop.xlane.xlu0 %612
    %v614 = vsel %vm377, %v541, -inf
    %615 = vmax.xlane.f32.xlu0 %v614
    %v616 = vpop.xlane.xlu0 %615
    %v617 = vsel %vm377, %v569, -inf
    %618 = vmax.xlane.f32.xlu0 %v617
    %v619 = vpop.xlane.xlu0 %618
    %v620 = vsel %vm377, %v597, -inf
    %621 = vmax.xlane.f32.xlu0 %v620
    %v622 = vpop.xlane.xlu0 %621
    %v623 = vsub.f32 %v401, %v601
    %v624 = vsub.f32 %v429, %v604
    %v625 = vsub.f32 %v457, %v607
    %v626 = vsub.f32 %v485, %v610
    %v627 = vsub.f32 %v513, %v613
    %v628 = vsub.f32 %v541, %v616
    %v629 = vsub.f32 %v569, %v619
    %v630 = vsub.f32 %v597, %v622
    %v631 = vmul.f32 %v623, 1.442695
    %v632 = vpow.pop %v631
    %v633 = vmul.f32 %v624, 1.442695
    %v634 = vpow.pop %v633
    %v635 = vmul.f32 %v625, 1.442695
    %v636 = vpow.pop %v635
    %v637 = vmul.f32 %v626, 1.442695
    %v638 = vpow.pop %v637
    %v639 = vmul.f32 %v627, 1.442695
    %v640 = vpow.pop %v639
    %v641 = vmul.f32 %v628, 1.442695
    %v642 = vpow.pop %v641
    %v643 = vmul.f32 %v629, 1.442695
    %v644 = vpow.pop %v643
    %v645 = vmul.f32 %v630, 1.442695
    %v646 = vpow.pop %v645
    %v647 = vsel %vm377, %v632, 0.0
    %648 = vadd.xlane.f32.xlu0 %v647
    %v649 = vpop.xlane.xlu0 %648
    %v650 = vsel %vm377, %v634, 0.0
    %651 = vadd.xlane.f32.xlu0 %v650
    %v652 = vpop.xlane.xlu0 %651
    %v653 = vsel %vm377, %v636, 0.0
    %654 = vadd.xlane.f32.xlu0 %v653
    %v655 = vpop.xlane.xlu0 %654
    %v656 = vsel %vm377, %v638, 0.0
    %657 = vadd.xlane.f32.xlu0 %v656
    %v658 = vpop.xlane.xlu0 %657
    %v659 = vsel %vm377, %v640, 0.0
    %660 = vadd.xlane.f32.xlu0 %v659
    %v661 = vpop.xlane.xlu0 %660
    %v662 = vsel %vm377, %v642, 0.0
    %663 = vadd.xlane.f32.xlu0 %v662
    %v664 = vpop.xlane.xlu0 %663
    %v665 = vsel %vm377, %v644, 0.0
    %666 = vadd.xlane.f32.xlu0 %v665
    %v667 = vpop.xlane.xlu0 %666
    %v668 = vsel %vm377, %v646, 0.0
    %669 = vadd.xlane.f32.xlu0 %v668
    %v670 = vpop.xlane.xlu0 %669
    %v671 = vrcp.pop %v649
    %v672 = vmul.f32 %v649, %v671
    %v673 = vsub.f32 1.0, %v672
    %v674 = vmul.f32 %v671, %v673
    %v675 = vadd.f32 %v671, %v674
    %vm676 = vweird.f32 %v649
    %vm677 = vweird.f32 %v671
    %vm678 = vmor %vm676, %vm677
    %v679 = vsel %vm678, %v671, %v675
    %v680 = vand.u32 2147483647, %v649
    %vm681 = vcmp.eq.f32.partialorder %v680, 8.507059e+37
    %v682 = vand.u32 %v649, 2147483648
    %v683 = vor.u32 1.1754944e-38, %v682
    %v684 = vsel %vm681, %v683, %v679
    %v685 = vrcp.pop %v652
    %v686 = vmul.f32 %v652, %v685
    %v687 = vsub.f32 1.0, %v686
    %v688 = vmul.f32 %v685, %v687
    %v689 = vadd.f32 %v685, %v688
    %vm690 = vweird.f32 %v652
    %vm691 = vweird.f32 %v685
    %vm692 = vmor %vm690, %vm691
    %v693 = vsel %vm692, %v685, %v689
    %v694 = vand.u32 2147483647, %v652
    %vm695 = vcmp.eq.f32.partialorder %v694, 8.507059e+37
    %v696 = vand.u32 %v652, 2147483648
    %v697 = vor.u32 1.1754944e-38, %v696
    %v698 = vsel %vm695, %v697, %v693
    %v699 = vrcp.pop %v655
    %v700 = vmul.f32 %v655, %v699
    %v701 = vsub.f32 1.0, %v700
    %v702 = vmul.f32 %v699, %v701
    %v703 = vadd.f32 %v699, %v702
    %vm704 = vweird.f32 %v655
    %vm705 = vweird.f32 %v699
    %vm706 = vmor %vm704, %vm705
    %v707 = vsel %vm706, %v699, %v703
    %v708 = vand.u32 2147483647, %v655
    %vm709 = vcmp.eq.f32.partialorder %v708, 8.507059e+37
    %v710 = vand.u32 %v655, 2147483648
    %v711 = vor.u32 1.1754944e-38, %v710
    %v712 = vsel %vm709, %v711, %v707
    %v713 = vrcp.pop %v658
    %v714 = vmul.f32 %v658, %v713
    %v715 = vsub.f32 1.0, %v714
    %v716 = vmul.f32 %v713, %v715
    %v717 = vadd.f32 %v713, %v716
    %vm718 = vweird.f32 %v658
    %vm719 = vweird.f32 %v713
    %vm720 = vmor %vm718, %vm719
    %v721 = vsel %vm720, %v713, %v717
    %v722 = vand.u32 2147483647, %v658
    %vm723 = vcmp.eq.f32.partialorder %v722, 8.507059e+37
    %v724 = vand.u32 %v658, 2147483648
    %v725 = vor.u32 1.1754944e-38, %v724
    %v726 = vsel %vm723, %v725, %v721
    %v727 = vrcp.pop %v661
    %v728 = vmul.f32 %v661, %v727
    %v729 = vsub.f32 1.0, %v728
    %v730 = vmul.f32 %v727, %v729
    %v731 = vadd.f32 %v727, %v730
    %vm732 = vweird.f32 %v661
    %vm733 = vweird.f32 %v727
    %vm734 = vmor %vm732, %vm733
    %v735 = vsel %vm734, %v727, %v731
    %v736 = vand.u32 2147483647, %v661
    %vm737 = vcmp.eq.f32.partialorder %v736, 8.507059e+37
    %v738 = vand.u32 %v661, 2147483648
    %v739 = vor.u32 1.1754944e-38, %v738
    %v740 = vsel %vm737, %v739, %v735
    %v741 = vrcp.pop %v664
    %v742 = vmul.f32 %v664, %v741
    %v743 = vsub.f32 1.0, %v742
    %v744 = vmul.f32 %v741, %v743
    %v745 = vadd.f32 %v741, %v744
    %vm746 = vweird.f32 %v664
    %vm747 = vweird.f32 %v741
    %vm748 = vmor %vm746, %vm747
    %v749 = vsel %vm748, %v741, %v745
    %v750 = vand.u32 2147483647, %v664
    %vm751 = vcmp.eq.f32.partialorder %v750, 8.507059e+37
    %v752 = vand.u32 %v664, 2147483648
    %v753 = vor.u32 1.1754944e-38, %v752
    %v754 = vsel %vm751, %v753, %v749
    %v755 = vrcp.pop %v667
    %v756 = vmul.f32 %v667, %v755
    %v757 = vsub.f32 1.0, %v756
    %v758 = vmul.f32 %v755, %v757
    %v759 = vadd.f32 %v755, %v758
    %vm760 = vweird.f32 %v667
    %vm761 = vweird.f32 %v755
    %vm762 = vmor %vm760, %vm761
    %v763 = vsel %vm762, %v755, %v759
    %v764 = vand.u32 2147483647, %v667
    %vm765 = vcmp.eq.f32.partialorder %v764, 8.507059e+37
    %v766 = vand.u32 %v667, 2147483648
    %v767 = vor.u32 1.1754944e-38, %v766
    %v768 = vsel %vm765, %v767, %v763
    %v769 = vrcp.pop %v670
    %v770 = vmul.f32 %v670, %v769
    %v771 = vsub.f32 1.0, %v770
    %v772 = vmul.f32 %v769, %v771
    %v773 = vadd.f32 %v769, %v772
    %vm774 = vweird.f32 %v670
    %vm775 = vweird.f32 %v769
    %vm776 = vmor %vm774, %vm775
    %v777 = vsel %vm776, %v769, %v773
    %v778 = vand.u32 2147483647, %v670
    %vm779 = vcmp.eq.f32.partialorder %v778, 8.507059e+37
    %v780 = vand.u32 %v670, 2147483648
    %v781 = vor.u32 1.1754944e-38, %v780
    %v782 = vsel %vm779, %v781, %v777
    %v783 = vmul.f32 %v632, %v684
    %v784 = vmul.f32 %v634, %v698
    %v785 = vmul.f32 %v636, %v712
    %v786 = vmul.f32 %v638, %v726
    %v787 = vmul.f32 %v640, %v740
    %v788 = vmul.f32 %v642, %v754
    %v789 = vmul.f32 %v644, %v768
    %v790 = vmul.f32 %v646, %v782
    %791 = vrot.lane.b32.xlu0 %v149, 64
    %v792 = vpop.permute.xlu0 %791
    %v795 = vsel %vm377, %v783, 0
    %797 = vmatpush.msra.mxu0 0.0
    %798 = vmatpush.msra.mxu0 0.0
    %799 = vmatpush.msra.mxu0 0.0
    %800 = vmatpush.msra.mxu0 0.0
    %801 = vmatpush.msra.mxu0 0.0
    %802 = vmatpush.msra.mxu0 0.0
    %803 = vmatpush.msra.mxu0 0.0
    %804 = vmatpush.msra.mxu0 0.0
    %805 = vmatpush.msra.mxu0 0.0
    %806 = vmatpush.msra.mxu0 0.0
    %807 = vmatpush.msra.mxu0 0.0
    %808 = vmatpush.msra.mxu0 0.0
    %809 = vmatpush.msra.mxu0 0.0
    %810 = vmatpush.msra.mxu0 0.0
    %811 = vmatpush.msra.mxu0 0.0
    %812 = vmatpush.msra.mxu0 %v792
    %813 = vmatmul.f32.gmra.mxu0 %v795
    %v814 = vpop.f32.mrf.mxu0
    %v815 = vadd.f32 0.0, %v814
    %816 = vdwg.mxu0
    %817 = vrot.lane.b32.xlu0 %v152, 64
    %v818 = vpop.permute.xlu0 %817
    %v821 = vsel %vm377, %v784, 0
    %823 = vmatpush.msra.mxu0 0.0
    %824 = vmatpush.msra.mxu0 0.0
    %825 = vmatpush.msra.mxu0 0.0
    %826 = vmatpush.msra.mxu0 0.0
    %827 = vmatpush.msra.mxu0 0.0
    %828 = vmatpush.msra.mxu0 0.0
    %829 = vmatpush.msra.mxu0 0.0
    %830 = vmatpush.msra.mxu0 0.0
    %831 = vmatpush.msra.mxu0 0.0
    %832 = vmatpush.msra.mxu0 0.0
    %833 = vmatpush.msra.mxu0 0.0
    %834 = vmatpush.msra.mxu0 0.0
    %835 = vmatpush.msra.mxu0 0.0
    %836 = vmatpush.msra.mxu0 0.0
    %837 = vmatpush.msra.mxu0 0.0
    %838 = vmatpush.msra.mxu0 %v818
    %839 = vmatmul.f32.gmra.mxu0 %v821
    %v840 = vpop.f32.mrf.mxu0
    %v841 = vadd.f32 0.0, %v840
    %842 = vdwg.mxu0
    %843 = vrot.lane.b32.xlu0 %v157, 64
    %v844 = vpop.permute.xlu0 %843
    %v847 = vsel %vm377, %v785, 0
    %849 = vmatpush.msra.mxu0 0.0
    %850 = vmatpush.msra.mxu0 0.0
    %851 = vmatpush.msra.mxu0 0.0
    %852 = vmatpush.msra.mxu0 0.0
    %853 = vmatpush.msra.mxu0 0.0
    %854 = vmatpush.msra.mxu0 0.0
    %855 = vmatpush.msra.mxu0 0.0
    %856 = vmatpush.msra.mxu0 0.0
    %857 = vmatpush.msra.mxu0 0.0
    %858 = vmatpush.msra.mxu0 0.0
    %859 = vmatpush.msra.mxu0 0.0
    %860 = vmatpush.msra.mxu0 0.0
    %861 = vmatpush.msra.mxu0 0.0
    %862 = vmatpush.msra.mxu0 0.0
    %863 = vmatpush.msra.mxu0 0.0
    %864 = vmatpush.msra.mxu0 %v844
    %865 = vmatmul.f32.gmra.mxu0 %v847
    %v866 = vpop.f32.mrf.mxu0
    %v867 = vadd.f32 0.0, %v866
    %868 = vdwg.mxu0
    %869 = vrot.lane.b32.xlu0 %v159, 64
    %v870 = vpop.permute.xlu0 %869
    %v873 = vsel %vm377, %v786, 0
    %875 = vmatpush.msra.mxu0 0.0
    %876 = vmatpush.msra.mxu0 0.0
    %877 = vmatpush.msra.mxu0 0.0
    %878 = vmatpush.msra.mxu0 0.0
    %879 = vmatpush.msra.mxu0 0.0
    %880 = vmatpush.msra.mxu0 0.0
    %881 = vmatpush.msra.mxu0 0.0
    %882 = vmatpush.msra.mxu0 0.0
    %883 = vmatpush.msra.mxu0 0.0
    %884 = vmatpush.msra.mxu0 0.0
    %885 = vmatpush.msra.mxu0 0.0
    %886 = vmatpush.msra.mxu0 0.0
    %887 = vmatpush.msra.mxu0 0.0
    %888 = vmatpush.msra.mxu0 0.0
    %889 = vmatpush.msra.mxu0 0.0
    %890 = vmatpush.msra.mxu0 %v870
    %891 = vmatmul.f32.gmra.mxu0 %v873
    %v892 = vpop.f32.mrf.mxu0
    %v893 = vadd.f32 0.0, %v892
    %894 = vdwg.mxu0
    %895 = vrot.lane.b32.xlu0 %v163, 64
    %v896 = vpop.permute.xlu0 %895
    %v899 = vsel %vm377, %v787, 0
    %901 = vmatpush.msra.mxu0 0.0
    %902 = vmatpush.msra.mxu0 0.0
    %903 = vmatpush.msra.mxu0 0.0
    %904 = vmatpush.msra.mxu0 0.0
    %905 = vmatpush.msra.mxu0 0.0
    %906 = vmatpush.msra.mxu0 0.0
    %907 = vmatpush.msra.mxu0 0.0
    %908 = vmatpush.msra.mxu0 0.0
    %909 = vmatpush.msra.mxu0 0.0
    %910 = vmatpush.msra.mxu0 0.0
    %911 = vmatpush.msra.mxu0 0.0
    %912 = vmatpush.msra.mxu0 0.0
    %913 = vmatpush.msra.mxu0 0.0
    %914 = vmatpush.msra.mxu0 0.0
    %915 = vmatpush.msra.mxu0 0.0
    %916 = vmatpush.msra.mxu0 %v896
    %917 = vmatmul.f32.gmra.mxu0 %v899
    %v918 = vpop.f32.mrf.mxu0
    %v919 = vadd.f32 0.0, %v918
    %920 = vdwg.mxu0
    %921 = vrot.lane.b32.xlu0 %v165, 64
    %v922 = vpop.permute.xlu0 %921
    %v925 = vsel %vm377, %v788, 0
    %927 = vmatpush.msra.mxu0 0.0
    %928 = vmatpush.msra.mxu0 0.0
    %929 = vmatpush.msra.mxu0 0.0
    %930 = vmatpush.msra.mxu0 0.0
    %931 = vmatpush.msra.mxu0 0.0
    %932 = vmatpush.msra.mxu0 0.0
    %933 = vmatpush.msra.mxu0 0.0
    %934 = vmatpush.msra.mxu0 0.0
    %935 = vmatpush.msra.mxu0 0.0
    %936 = vmatpush.msra.mxu0 0.0
    %937 = vmatpush.msra.mxu0 0.0
    %938 = vmatpush.msra.mxu0 0.0
    %939 = vmatpush.msra.mxu0 0.0
    %940 = vmatpush.msra.mxu0 0.0
    %941 = vmatpush.msra.mxu0 0.0
    %942 = vmatpush.msra.mxu0 %v922
    %943 = vmatmul.f32.gmra.mxu0 %v925
    %v944 = vpop.f32.mrf.mxu0
    %v945 = vadd.f32 0.0, %v944
    %946 = vdwg.mxu0
    %947 = vrot.lane.b32.xlu0 %v169, 64
    %v948 = vpop.permute.xlu0 %947
    %v951 = vsel %vm377, %v789, 0
    %953 = vmatpush.msra.mxu0 0.0
    %954 = vmatpush.msra.mxu0 0.0
    %955 = vmatpush.msra.mxu0 0.0
    %956 = vmatpush.msra.mxu0 0.0
    %957 = vmatpush.msra.mxu0 0.0
    %958 = vmatpush.msra.mxu0 0.0
    %959 = vmatpush.msra.mxu0 0.0
    %960 = vmatpush.msra.mxu0 0.0
    %961 = vmatpush.msra.mxu0 0.0
    %962 = vmatpush.msra.mxu0 0.0
    %963 = vmatpush.msra.mxu0 0.0
    %964 = vmatpush.msra.mxu0 0.0
    %965 = vmatpush.msra.mxu0 0.0
    %966 = vmatpush.msra.mxu0 0.0
    %967 = vmatpush.msra.mxu0 0.0
    %968 = vmatpush.msra.mxu0 %v948
    %969 = vmatmul.f32.gmra.mxu0 %v951
    %v970 = vpop.f32.mrf.mxu0
    %v971 = vadd.f32 0.0, %v970
    %972 = vdwg.mxu0
    %973 = vrot.lane.b32.xlu0 %v171, 64
    %v974 = vpop.permute.xlu0 %973
    %v977 = vsel %vm377, %v790, 0
    %979 = vmatpush.msra.mxu0 0.0
    %980 = vmatpush.msra.mxu0 0.0
    %981 = vmatpush.msra.mxu0 0.0
    %982 = vmatpush.msra.mxu0 0.0
    %983 = vmatpush.msra.mxu0 0.0
    %984 = vmatpush.msra.mxu0 0.0
    %985 = vmatpush.msra.mxu0 0.0
    %986 = vmatpush.msra.mxu0 0.0
    %987 = vmatpush.msra.mxu0 0.0
    %988 = vmatpush.msra.mxu0 0.0
    %989 = vmatpush.msra.mxu0 0.0
    %990 = vmatpush.msra.mxu0 0.0
    %991 = vmatpush.msra.mxu0 0.0
    %992 = vmatpush.msra.mxu0 0.0
    %993 = vmatpush.msra.mxu0 0.0
    %994 = vmatpush.msra.mxu0 %v974
    %995 = vmatmul.f32.gmra.mxu0 %v977
    %v996 = vpop.f32.mrf.mxu0
    %v997 = vadd.f32 0.0, %v996
    %998 = vdwg.mxu0
    %1001 = vrot.lane.b32.xlu0 %v867, 8
    %v1002 = vpop.permute.xlu0 %1001
    %1003 = vrot.lane.b32.xlu0 %v893, 8
    %v1004 = vpop.permute.xlu0 %1003
    %1009 = vrot.lane.b32.xlu0 %v919, 16
    %v1010 = vpop.permute.xlu0 %1009
    %1011 = vrot.lane.b32.xlu0 %v945, 16
    %v1012 = vpop.permute.xlu0 %1011
    %1017 = vrot.lane.b32.xlu0 %v971, 24
    %v1018 = vpop.permute.xlu0 %1017
    %1019 = vrot.lane.b32.xlu0 %v997, 24
    %v1020 = vpop.permute.xlu0 %1019
    %v1023 = vsel %vm377, %v815, %v1002
    %v1024 = vsel %vm377, %v841, %v1004
    %vm1025 = vcmask 130048
    %v1026 = vsel %vm1025, %v1023, %v1010
    %v1027 = vsel %vm1025, %v1024, %v1012
    %vm1028 = vcmask 195584
    %v1029 = vsel %vm1028, %v1026, %v1018
    %v1030 = vsel %vm1028, %v1027, %v1020
    %v1031 = vld [vmem:[%s2] sm:$0xff]
    %v1032 = vld [vmem:[%s2 + $0x10] sm:$0xff]
    %v1033 = vld [vmem:[%s2 + $0x20] sm:$0xff]
    %v1034 = vld [vmem:[%s2 + $0x30] sm:$0xff]
    %v1035 = vld [vmem:[#allocation2] sm:$0x1]
    %v1037 = vperm.slane %v1035, 0
    %1042 = vrot.lane.b32.xlu0 %v1031, 32
    %v1043 = vpop.permute.xlu0 %1042
    %1044 = vrot.lane.b32.xlu0 %v1032, 32
    %v1045 = vpop.permute.xlu0 %1044
    %1046 = vrot.lane.b32.xlu0 %v1033, 32
    %v1047 = vpop.permute.xlu0 %1046
    %1048 = vrot.lane.b32.xlu0 %v1034, 32
    %v1049 = vpop.permute.xlu0 %1048
    %1054 = vrot.lane.b32.xlu0 %v1037, 32
    %v1055 = vpop.permute.xlu0 %1054
    %v1058 = vsel %vm59, %v1029, 0
    %v1061 = vsel %vm59, %v1030, 0
    %1063 = vmatpush.msra.mxu0 0.0
    %1064 = vmatpush.msra.mxu0 0.0
    %1065 = vmatpush.msra.mxu0 0.0
    %1066 = vmatpush.msra.mxu0 0.0
    %1067 = vmatpush.msra.mxu0 0.0
    %1068 = vmatpush.msra.mxu0 0.0
    %1069 = vmatpush.msra.mxu0 0.0
    %1070 = vmatpush.msra.mxu0 0.0
    %1071 = vmatpush.msra.mxu0 0.0
    %1072 = vmatpush.msra.mxu0 0.0
    %1073 = vmatpush.msra.mxu0 0.0
    %1074 = vmatpush.msra.mxu0 0.0
    %1075 = vmatpush.msra.mxu0 %v1049
    %1076 = vmatpush.msra.mxu0 %v1047
    %1077 = vmatpush.msra.mxu0 %v1045
    %1078 = vmatpush.msra.mxu0 %v1043
    %1079 = vmatmul.f32.gmra.mxu0 %v1058
    %v1080 = vpop.f32.mrf.mxu0
    %v1081 = vadd.f32 %v1055, %v1080
    %1082 = vmatmul.f32.gmra.mxu0 %v1061
    %v1083 = vpop.f32.mrf.mxu0
    %v1084 = vadd.f32 %v1055, %v1083
    %1085 = vdwg.mxu0
    %v1086 = vadd.f32 %v1081, %v52
    %v1087 = vadd.f32 %v1084, %v53
    %v1088 = vsel %vm59, %v1086, 0.0
    %1089 = vadd.xlane.f32.xlu0 %v1088
    %v1090 = vpop.xlane.xlu0 %1089
    %v1091 = vsel %vm59, %v1087, 0.0
    %1092 = vadd.xlane.f32.xlu0 %v1091
    %v1093 = vpop.xlane.xlu0 %1092
    %v1094 = vmul.f32 %v1090, %v72
    %v1095 = vmul.f32 %v1093, %v72
    %v1096 = vsub.f32 %v1086, %v1094
    %v1097 = vsub.f32 %v1087, %v1095
    %v1098 = vmul.f32 %v1096, %v1096
    %v1099 = vmul.f32 %v1097, %v1097
    %v1100 = vsel %vm59, %v1098, 0.0
    %1101 = vadd.xlane.f32.xlu0 %v1100
    %v1102 = vpop.xlane.xlu0 %1101
    %v1103 = vsel %vm59, %v1099, 0.0
    %1104 = vadd.xlane.f32.xlu0 %v1103
    %v1105 = vpop.xlane.xlu0 %1104
    %v1106 = vmul.f32 %v1102, %v72
    %v1107 = vmul.f32 %v1105, %v72
    %v1108 = vadd.f32 %v1106, 1e-05
    %v1109 = vadd.f32 %v1107, 1e-05
    %v1110 = vrsqrt.pop %v1108
    %v1111 = vmul.f32 %v1110, %v1108
    %v1112 = vmul.f32 %v1111, %v1110
    %v1113 = vmul.f32 0.5, %v1112
    %v1114 = vsub.f32 1.5, %v1113
    %v1115 = vmul.f32 %v1110, %v1114
    %vm1116 = vweird.f32 %v1108
    %vm1117 = vweird.f32 %v1110
    %vm1118 = vmor %vm1116, %vm1117
    %v1119 = vsel %vm1118, %v1110, %v1115
    %v1120 = vrsqrt.pop %v1109
    %v1121 = vmul.f32 %v1120, %v1109
    %v1122 = vmul.f32 %v1121, %v1120
    %v1123 = vmul.f32 0.5, %v1122
    %v1124 = vsub.f32 1.5, %v1123
    %v1125 = vmul.f32 %v1120, %v1124
    %vm1126 = vweird.f32 %v1109
    %vm1127 = vweird.f32 %v1120
    %vm1128 = vmor %vm1126, %vm1127
    %v1129 = vsel %vm1128, %v1120, %v1125
    %v1130 = vmul.f32 %v1096, %v1119
    %v1131 = vmul.f32 %v1097, %v1129
    %v1132 = vperm.slane %v56, 0
    %v1133 = vmul.f32 %v1130, %v1132
    %v1134 = vmul.f32 %v1131, %v1132
    %v1135 = vperm.slane %v57, 0
    %v1136 = vadd.f32 %v1133, %v1135
    %v1137 = vadd.f32 %v1134, %v1135
    %v1138 = vld [vmem:[%s2 + $0x8] sm:$0xff]
    %v1139 = vld [vmem:[%s2 + $0x18] sm:$0xff]
    %v1140 = vld [vmem:[%s2 + $0x28] sm:$0xff]
    %v1141 = vld [vmem:[%s2 + $0x38] sm:$0xff]
    %v1142 = vld [vmem:[#allocation2 + $0x1] sm:$0x1]
    %v1144 = vperm.slane %v1142, 0
    %v1147 = vsel %vm59, %v1136, 0
    %v1150 = vsel %vm59, %v1137, 0
    %1152 = vmatpush.msra.mxu0 0.0
    %1153 = vmatpush.msra.mxu0 0.0
    %1154 = vmatpush.msra.mxu0 0.0
    %1155 = vmatpush.msra.mxu0 0.0
    %1156 = vmatpush.msra.mxu0 0.0
    %1157 = vmatpush.msra.mxu0 0.0
    %1158 = vmatpush.msra.mxu0 0.0
    %1159 = vmatpush.msra.mxu0 0.0
    %1160 = vmatpush.msra.mxu0 0.0
    %1161 = vmatpush.msra.mxu0 0.0
    %1162 = vmatpush.msra.mxu0 0.0
    %1163 = vmatpush.msra.mxu0 0.0
    %1164 = vmatpush.msra.mxu0 %v1141
    %1165 = vmatpush.msra.mxu0 %v1140
    %1166 = vmatpush.msra.mxu0 %v1139
    %1167 = vmatpush.msra.mxu0 %v1138
    %1168 = vmatmul.f32.gmra.mxu0 %v1147
    %v1169 = vpop.f32.mrf.mxu0
    %v1170 = vadd.f32 %v1144, %v1169
    %1171 = vmatmul.f32.gmra.mxu0 %v1150
    %v1172 = vpop.f32.mrf.mxu0
    %v1173 = vadd.f32 %v1144, %v1172
    %1174 = vdwg.mxu0
    %v1175 = vmul.f32 %v1170, 0.5
    %v1176 = vmul.f32 %v1173, 0.5
    %v1177 = vrcp.pop 1.4142135
    %v1178 = vmul.f32 1.4142135, %v1177
    %v1179 = vsub.f32 1.0, %v1178
    %v1180 = vmul.f32 %v1177, %v1179
    %v1181 = vadd.f32 %v1177, %v1180
    %vm1182 = vweird.f32 %v1177
    %v1183 = vsel %vm1182, %v1177, %v1181
    %v1184 = vmul.f32 %v1170, %v1183
    %v1185 = vmul.f32 %v1173, %v1183
    %v1186 = vmul.f32 %v1184, %v1184
    %v1187 = vmin.f32 16.0, %v1186
    %v1188 = vmul.f32 %v1187, 2.1237322e-06
    %v1189 = vadd.f32 %v1188, 0.00028619796
    %v1190 = vmul.f32 %v1187, %v1189
    %v1191 = vadd.f32 %v1190, 0.0036580483
    %v1192 = vmul.f32 %v1187, %v1191
    %v1193 = vadd.f32 %v1192, 0.05243302
    %v1194 = vmul.f32 %v1187, %v1193
    %v1195 = vadd.f32 %v1194, 0.18741608
    %v1196 = vmul.f32 %v1187, %v1195
    %v1197 = vadd.f32 %v1196, 1.1283791
    %v1198 = vmul.f32 %v1184, %v1197
    %v1199 = vmul.f32 %v1187, 3.8918573e-05
    %v1200 = vadd.f32 %v1199, 0.001143296
    %v1201 = vmul.f32 %v1187, %v1200
    %v1202 = vadd.f32 %v1201, 0.014752088
    %v1203 = vmul.f32 %v1187, %v1202
    %v1204 = vadd.f32 %v1203, 0.112945676
    %v1205 = vmul.f32 %v1187, %v1204
    %v1206 = vadd.f32 %v1205, 0.4994258
    %v1207 = vmul.f32 %v1187, %v1206
    %v1208 = vadd.f32 %v1207, 1.0
    %v1209 = vrcp.pop %v1208
    %v1210 = vmul.f32 %v1208, %v1209
    %v1211 = vsub.f32 1.0, %v1210
    %v1212 = vmul.f32 %v1209, %v1211
    %v1213 = vadd.f32 %v1209, %v1212
    %vm1214 = vweird.f32 %v1208
    %vm1215 = vweird.f32 %v1209
    %vm1216 = vmor %vm1214, %vm1215
    %v1217 = vsel %vm1216, %v1209, %v1213
    %v1218 = vand.u32 2147483647, %v1208
    %vm1219 = vcmp.eq.f32.partialorder %v1218, 8.507059e+37
    %v1220 = vand.u32 %v1208, 2147483648
    %v1221 = vor.u32 1.1754944e-38, %v1220
    %v1222 = vsel %vm1219, %v1221, %v1217
    %v1223 = vmul.f32 %v1198, %v1222
    %v1224 = vmin.f32 %v1223, 1.0
    %v1225 = vmax.f32 %v1224, -1.0
    %v1226 = vmul.f32 %v1185, %v1185
    %v1227 = vmin.f32 16.0, %v1226
    %v1228 = vmul.f32 %v1227, 2.1237322e-06
    %v1229 = vadd.f32 %v1228, 0.00028619796
    %v1230 = vmul.f32 %v1227, %v1229
    %v1231 = vadd.f32 %v1230, 0.0036580483
    %v1232 = vmul.f32 %v1227, %v1231
    %v1233 = vadd.f32 %v1232, 0.05243302
    %v1234 = vmul.f32 %v1227, %v1233
    %v1235 = vadd.f32 %v1234, 0.18741608
    %v1236 = vmul.f32 %v1227, %v1235
    %v1237 = vadd.f32 %v1236, 1.1283791
    %v1238 = vmul.f32 %v1185, %v1237
    %v1239 = vmul.f32 %v1227, 3.8918573e-05
    %v1240 = vadd.f32 %v1239, 0.001143296
    %v1241 = vmul.f32 %v1227, %v1240
    %v1242 = vadd.f32 %v1241, 0.014752088
    %v1243 = vmul.f32 %v1227, %v1242
    %v1244 = vadd.f32 %v1243, 0.112945676
    %v1245 = vmul.f32 %v1227, %v1244
    %v1246 = vadd.f32 %v1245, 0.4994258
    %v1247 = vmul.f32 %v1227, %v1246
    %v1248 = vadd.f32 %v1247, 1.0
    %v1249 = vrcp.pop %v1248
    %v1250 = vmul.f32 %v1248, %v1249
    %v1251 = vsub.f32 1.0, %v1250
    %v1252 = vmul.f32 %v1249, %v1251
    %v1253 = vadd.f32 %v1249, %v1252
    %vm1254 = vweird.f32 %v1248
    %vm1255 = vweird.f32 %v1249
    %vm1256 = vmor %vm1254, %vm1255
    %v1257 = vsel %vm1256, %v1249, %v1253
    %v1258 = vand.u32 2147483647, %v1248
    %vm1259 = vcmp.eq.f32.partialorder %v1258, 8.507059e+37
    %v1260 = vand.u32 %v1248, 2147483648
    %v1261 = vor.u32 1.1754944e-38, %v1260
    %v1262 = vsel %vm1259, %v1261, %v1257
    %v1263 = vmul.f32 %v1238, %v1262
    %v1264 = vmin.f32 %v1263, 1.0
    %v1265 = vmax.f32 %v1264, -1.0
    %v1266 = vadd.f32 %v1225, 1.0
    %v1267 = vadd.f32 %v1265, 1.0
    %v1268 = vmul.f32 %v1175, %v1266
    %v1269 = vmul.f32 %v1176, %v1267
    %v1270 = vld [vmem:[%s4] sm:$0xff]
    %v1271 = vld [vmem:[%s4 + $0x8] sm:$0xff]
    %v1272 = vld [vmem:[%s4 + $0x10] sm:$0xff]
    %v1273 = vld [vmem:[%s4 + $0x18] sm:$0xff]
    %v1274 = vld [vmem:[%s4 + $0x20] sm:$0xff]
    %v1275 = vld [vmem:[%s4 + $0x28] sm:$0xff]
    %v1276 = vld [vmem:[%s4 + $0x30] sm:$0xff]
    %v1277 = vld [vmem:[%s4 + $0x38] sm:$0xff]
    %v1278 = vperm.slane %v58, 0
    %vm1279 = vcmask 523264
    %v1281 = vsel %vm1279, %v1268, 0
    %v1284 = vsel %vm1279, %v1269, 0
    %1286 = vmatpush.msra.mxu0 0.0
    %1287 = vmatpush.msra.mxu0 0.0
    %1288 = vmatpush.msra.mxu0 0.0
    %1289 = vmatpush.msra.mxu0 0.0
    %1290 = vmatpush.msra.mxu0 0.0
    %1291 = vmatpush.msra.mxu0 0.0
    %1292 = vmatpush.msra.mxu0 0.0
    %1293 = vmatpush.msra.mxu0 0.0
    %1294 = vmatpush.msra.mxu0 %v1277
    %1295 = vmatpush.msra.mxu0 %v1276
    %1296 = vmatpush.msra.mxu0 %v1275
    %1297 = vmatpush.msra.mxu0 %v1274
    %1298 = vmatpush.msra.mxu0 %v1273
    %1299 = vmatpush.msra.mxu0 %v1272
    %1300 = vmatpush.msra.mxu0 %v1271
    %1301 = vmatpush.msra.mxu0 %v1270
    %1302 = vmatmul.f32.gmra.mxu0 %v1281
    %v1303 = vpop.f32.mrf.mxu0
    %v1304 = vadd.f32 %v1278, %v1303
    %1305 = vmatmul.f32.gmra.mxu0 %v1284
    %v1306 = vpop.f32.mrf.mxu0
    %v1307 = vadd.f32 %v1278, %v1306
    %1308 = vdwg.mxu0
    %v1309 = vadd.f32 %v1304, %v1086
    %v1310 = vadd.f32 %v1307, %v1087
    %1311 = vst.msk [vmem:[#allocation7] sm:$0xff] %vm59, %v1309
    %1312 = vst.msk [vmem:[#allocation7 + $0x8] sm:$0xff] %vm59, %v1310
    // Predicated region
    $region34: #{esm_layer_pallas.1} parent=1 // pred_check
      _
    $region35: #{esm_layer_pallas.1} parent=1 // pred_check_branch
      %1314 = sbr.rel (0) target = $region37
    $region36: #{esm_layer_pallas.1} parent=1 // pred_region
      %1316 = vsyncadd [#allocation4], 0
      %s1317 = sshll.u32 [#allocation7], 4
      %s1318 = int_to_ptr.vmem [resolvable:$true] %s1317
      %s1319 = sshll.u32 %s6, 4
      %s1320 = int_to_ptr.hbm [resolvable:$true] %s1319
      %1325 = dma.vmem_to_hbm [thread:$0]  %s1318, 256, %s1320, [#allocation4], 128, 128, 8
    $region37: #{esm_layer_pallas.1} parent=1 // pred_fallthru
      _
    // Predicated region
    $region38: #{esm_layer_pallas.1} parent=1 // pred_check
      _
    $region39: #{esm_layer_pallas.1} parent=1 // pred_check_branch
      %1327 = sbr.rel (0) target = $region41
    $region40: #{esm_layer_pallas.1} parent=1 // pred_region
      %1329 = dma.done [#allocation4], 256
    $region41: #{esm_layer_pallas.1} parent=1 // pred_fallthru
      _
    %1330 = vsyncpa [#allocation3], 1
    %1331 = vsyncpa [#allocation6], 1
    %1332 = vsyncpa [#allocation4], 1

</llo_original>
